<compile_context>
chip_gen: v7x
topology: tpu7x:2x2x1
jax: 0.10.0
libtpu: 0.0.40
codegen_flags: <defaults>
</compile_context>

<pallas_src>
import functools
import math

import jax
import jax.numpy as jnp
from jax.experimental import pallas as pl
from jax.experimental.pallas import tpu as pltpu


# --------------------------- fused encoder kernel ----------------------------

def _fused_encoder_kernel(xcat_ref, w_ref, rs_ref, rp_ref, rright_ref, out_ref, *,
                          n_heads, d_head, d_model, l_pn):
    """One grid step = one (layer, batch-row) pair.

    xcat_ref   : (1, L_pn + L_ps, D)   rows = [x_patch_size ; x_patch_num]
    w_ref      : (1, D, 2D)            [Wq * scale | Wk] for this layer
    rs_ref     : (W, L_pn)             tile-upsample matrix, patch-wise branch
    rp_ref     : (W, L_ps)             tile-upsample matrix, in-patch branch
    rright_ref : (L_pn + L_ps, 2W)     block-diag [rs^T 0 ; 0 rp^T]
    out_ref    : (1, 1, H, W, 2W)      per-head lane-dense slab [series | prior]
    """
    x = xcat_ref[0].astype(jnp.float32)                          # (L_tot, D)
    w = w_ref[0].astype(jnp.float32)                             # (D, 2D)
    # One wide projection matmul replaces the 4 small Wq/Wk x {branch} matmuls.
    qk = jnp.dot(x, w, preferred_element_type=jnp.float32)       # (L_tot, 2D)

    rs = rs_ref[...]                                             # (W, L_pn)
    rp = rp_ref[...]                                             # (W, L_ps)
    r_right = rright_ref[...]                                    # (L_tot, 2W)

    q, k = qk[:, :d_model], qk[:, d_model:]
    q_ps, q_pn = q[:l_pn, :], q[l_pn:, :]
    k_ps, k_pn = k[:l_pn, :], k[l_pn:, :]

    def attn_map(qh, kh):
        # scale is pre-folded into Wq; exact softmax (cheap at this score size).
        s = jax.lax.dot_general(qh, kh, (((1,), (1,)), ((), ())),
                                preferred_element_type=jnp.float32)
        m = jnp.max(s, axis=-1, keepdims=True)
        e = jnp.exp(s - m)
        return e / jnp.sum(e, axis=-1, keepdims=True)

    for h in range(n_heads):                                     # static unroll, H small
        lo, hi = h * d_head, (h + 1) * d_head
        a_s = attn_map(q_ps[:, lo:hi], k_ps[:, lo:hi])           # (L_pn, L_pn)
        a_p = attn_map(q_pn[:, lo:hi], k_pn[:, lo:hi])           # (L_ps, L_ps)
        # MXU tile-upsample (torch .repeat semantics, softmax applied BEFORE repeat):
        #   [rs @ a_s | rp @ a_p] @ blockdiag(rs^T, rp^T) = [tile(a_s) | tile(a_p)]
        left = jnp.concatenate(
            [jnp.dot(rs, a_s, preferred_element_type=jnp.float32),
             jnp.dot(rp, a_p, preferred_element_type=jnp.float32)], axis=-1)
        slab = jnp.dot(left, r_right, preferred_element_type=jnp.float32)  # (W, 2W)
        out_ref[0, 0, h] = slab.astype(out_ref.dtype)            # lane-dense 128-wide store


# ------------------------------ fused wrapper --------------------------------

def _rep_matrix(rows, cols, dtype=jnp.float32):
    """R[i, a] = 1 iff a == i % cols, so R @ A @ R^T == torch A.repeat(r, r)."""
    return (jnp.arange(rows)[:, None] % cols == jnp.arange(cols)[None, :]).astype(dtype)


def fused_encoder_forward(w_packed, x_patch_size, x_patch_num, win_size, n_heads):
    """Runs every encoder layer in one pallas_call.

    Returns fused maps of shape (E, B, H, W, 2W): [series | prior] on the last axis.
    """
    E, D, D2 = w_packed.shape
    B, l_pn, _ = x_patch_size.shape
    _, l_ps, _ = x_patch_num.shape
    W = win_size
    l_tot = l_pn + l_ps
    d_head = D // n_heads
    assert D2 == 2 * D
    assert W % l_pn == 0 and W % l_ps == 0

    # Concatenate both branches so one matmul projects everything.
    x_cat = jnp.concatenate([x_patch_size, x_patch_num], axis=1)          # (B, l_tot, D)

    rs = _rep_matrix(W, l_pn)                                             # (W, l_pn)
    rp = _rep_matrix(W, l_ps)                                             # (W, l_ps)
    r_right = jnp.concatenate(
        [jnp.concatenate([rs.T, jnp.zeros((l_pn, W), jnp.float32)], axis=1),
         jnp.concatenate([jnp.zeros((l_ps, W), jnp.float32), rp.T], axis=1)],
        axis=0)                                                           # (l_tot, 2W)

    kernel = functools.partial(_fused_encoder_kernel, n_heads=n_heads,
                               d_head=d_head, d_model=D, l_pn=l_pn)

    return pl.pallas_call(
        kernel,
        out_shape=jax.ShapeDtypeStruct((E, B, n_heads, W, 2 * W), jnp.float32),
        grid_spec=pltpu.PrefetchScalarGridSpec(
            num_scalar_prefetch=0,
            grid=(E, B),
            in_specs=[
                pl.BlockSpec((1, l_tot, D), lambda e, b: (b, 0, 0)),
                pl.BlockSpec((1, D, 2 * D), lambda e, b: (e, 0, 0)),
                pl.BlockSpec((W, l_pn), lambda e, b: (0, 0)),
                pl.BlockSpec((W, l_ps), lambda e, b: (0, 0)),
                pl.BlockSpec((l_tot, 2 * W), lambda e, b: (0, 0)),
            ],
            out_specs=pl.BlockSpec((1, 1, n_heads, W, 2 * W),
                                   lambda e, b: (e, b, 0, 0, 0)),
        ),
        compiler_params=pltpu.CompilerParams(
            dimension_semantics=("parallel", "parallel")),
    )(x_cat, w_packed, rs, rp, r_right)


# --------------------------------- modules -----------------------------------

class DACAttentionLayer:
    """Parameter container for one DAC attention layer (mirrors DAC_structure)."""

    def __init__(self, params, *, n_heads, patch_sizes, win_size):
        self.params = params            # {"Wq","Wk","Wv"}; Wv is dead w.r.t. outputs
        self.n_heads = n_heads
        self.patch_sizes = list(patch_sizes)
        self.win_size = win_size


class Encoder:
    """JAX/Pallas mirror of the PyTorch Encoder.

    The reference forward loops over attn_layers collecting (series, prior); here
    the whole loop is fused into a single pallas_call and the fused output is split
    back into per-layer lists so the returned structure matches the PyTorch module.
    """

    def __init__(self, attn_layers, norm_layer=None):
        self.attn_layers = list(attn_layers)
        self.norm = norm_layer          # not applied in the reference forward
        l0 = self.attn_layers[0]
        self.n_heads = l0.n_heads
        self.patch_sizes = l0.patch_sizes
        self.win_size = l0.win_size
        d_model = l0.params["Wq"].shape[0]
        scale = 1.0 / math.sqrt(d_model // self.n_heads)
        # Pack [Wq * scale | Wk] per layer -> (E, D, 2D): one weight stream, scale folded.
        self.w_packed = jnp.stack(
            [jnp.concatenate([l.params["Wq"] * scale, l.params["Wk"]], axis=1)
             for l in self.attn_layers])

    def __call__(self, x_patch_size, x_patch_num, x_ori, patch_index, attn_mask=None):
        # TODO(synk): attn_mask is accepted but unused and the Wv @ x_ori value
        # projection is never computed -- both are dead w.r.t. the returned
        # (series, prior) maps in DCdetector's DAC_structure.
        del attn_mask
        win = x_ori.shape[1]
        p = self.patch_sizes[patch_index]
        assert win == self.win_size
        assert x_patch_size.shape[1] * p == win
        assert x_patch_num.shape[1] * (win // p) == win

        fused = fused_encoder_forward(self.w_packed, x_patch_size, x_patch_num,
                                      win, self.n_heads)          # (E, B, H, W, 2W)
        n_layers = fused.shape[0]
        series_list = [fused[e, :, :, :, :win] for e in range(n_layers)]
        prior_list = [fused[e, :, :, :, win:] for e in range(n_layers)]
        return series_list, prior_list


# ----------------------------------- main ------------------------------------

if __name__ == "__main__":
    B = 2          # batch
    D = 32         # d_model
    H = 4          # heads
    PATCH = 8      # patch size
    WIN = 64       # window length
    L_PN = WIN // PATCH   # patch_num  (= 8): seq len of the patch-size branch
    L_PS = PATCH          # patch size (= 8): seq len of the patch-num branch
    E_LAYERS = 2
    PATCH_SIZES = [PATCH]

    key = jax.random.PRNGKey(0)
    k_xps, k_xpn, k_xori, k_par = jax.random.split(key, 4)

    x_patch_size = jax.random.normal(k_xps, (B, L_PN, D), dtype=jnp.float32)
    x_patch_num = jax.random.normal(k_xpn, (B, L_PS, D), dtype=jnp.float32)
    x_ori = jax.random.normal(k_xori, (B, WIN, D), dtype=jnp.float32)
    patch_index = 0

    # deterministic per-layer parameters
    layer_params = []
    layers = []
    for lk in jax.random.split(k_par, E_LAYERS):
        kq, kk, kv = jax.random.split(lk, 3)
        params = {
            "Wq": 0.02 * jax.random.normal(kq, (D, D), dtype=jnp.float32),
            "Wk": 0.02 * jax.random.normal(kk, (D, D), dtype=jnp.float32),
            # Wv kept for parameter parity; dead w.r.t. the returned maps.
            "Wv": 0.02 * jax.random.normal(kv, (D, D), dtype=jnp.float32),
        }
        layer_params.append(params)
        layers.append(DACAttentionLayer(params, n_heads=H,
                                        patch_sizes=PATCH_SIZES, win_size=WIN))

    encoder = Encoder(layers, norm_layer=None)

    @jax.jit
    def run(xps, xpn, xori):
        # patch_index is a static Python int closed over here.
        return encoder(xps, xpn, xori, patch_index, attn_mask=None)

    series_list, prior_list = run(x_patch_size, x_patch_num, x_ori)
    jax.block_until_ready((series_list, prior_list))

    assert len(series_list) == E_LAYERS and len(prior_list) == E_LAYERS
    assert series_list[0].shape == (B, H, WIN, WIN)
    assert prior_list[0].shape == (B, H, WIN, WIN)

    # Pure-JAX reference check for every layer.
    def ref_layer(params, xps, xpn):
        Dh = D // H
        sc = 1.0 / math.sqrt(Dh)

        def heads(x, w):
            y = jnp.einsum("bld,de->ble", x, w)
            Bq, L, _ = y.shape
            return y.reshape(Bq, L, H, Dh).transpose(0, 2, 1, 3)

        def amap(x, wq, wk):
            q = heads(x, wq)
            k = heads(x, wk)
            s = jnp.einsum("bhld,bhmd->bhlm", q, k) * sc
            return jax.nn.softmax(s, axis=-1)

        p = PATCH_SIZES[patch_index]
        return (jnp.tile(amap(xps, params["Wq"], params["Wk"]), (1, 1, p, p)),
                jnp.tile(amap(xpn, params["Wq"], params["Wk"]), (1, 1, WIN // p, WIN // p)))

    for e in range(E_LAYERS):
        ref_s, ref_p = ref_layer(layer_params[e], x_patch_size, x_patch_num)
        assert jnp.allclose(series_list[e], ref_s, atol=2e-3), f"series mismatch (layer {e})"
        assert jnp.allclose(prior_list[e], ref_p, atol=2e-3), f"prior mismatch (layer {e})"

    print("KERNEL_OK")
</pallas_src>

<mosaic_0001>
module attributes {stable_mosaic.version = 11 : i64} {
  func.func @_fused_encoder_kernel(%arg0: i32, %arg1: i32, %arg2: memref<1x16x32xf32, #tpu.memory_space<vmem>>, %arg3: memref<1x32x64xf32, #tpu.memory_space<vmem>>, %arg4: memref<64x8xf32, #tpu.memory_space<vmem>>, %arg5: memref<64x8xf32, #tpu.memory_space<vmem>>, %arg6: memref<16x128xf32, #tpu.memory_space<vmem>>, %arg7: memref<1x1x4x64x128xf32, #tpu.memory_space<vmem>>) attributes {dimension_semantics = [#tpu.dimension_semantics<parallel>, #tpu.dimension_semantics<parallel>], iteration_bounds = array<i64: 2, 2>, scalar_prefetch = 0 : i64, scratch_operands = 0 : i64, tpu.core_type = #tpu.core_type<tc>, window_params = [{transform_indices = @transform_0, window_bounds = array<i64: 1, 16, 32>}, {transform_indices = @transform_1, window_bounds = array<i64: 1, 32, 64>}, {pipeline_mode = #tpu.pipeline_mode<synchronous>, transform_indices = @transform_2, window_bounds = array<i64: 64, 8>}, {pipeline_mode = #tpu.pipeline_mode<synchronous>, transform_indices = @transform_3, window_bounds = array<i64: 64, 8>}, {pipeline_mode = #tpu.pipeline_mode<synchronous>, transform_indices = @transform_4, window_bounds = array<i64: 16, 128>}, {transform_indices = @transform_5, window_bounds = array<i64: 1, 1, 4, 64, 128>}]} {
    %c0 = arith.constant 0 : index
    %c0_0 = arith.constant 0 : index
    %c0_1 = arith.constant 0 : index
    %0 = vector.load %arg2[%c0, %c0_0, %c0_1] : memref<1x16x32xf32, #tpu.memory_space<vmem>>, vector<1x16x32xf32>
    %1 = vector.shape_cast %0 : vector<1x16x32xf32> to vector<16x32xf32>
    %c0_2 = arith.constant 0 : index
    %c0_3 = arith.constant 0 : index
    %c0_4 = arith.constant 0 : index
    %2 = vector.load %arg3[%c0_2, %c0_3, %c0_4] : memref<1x32x64xf32, #tpu.memory_space<vmem>>, vector<1x32x64xf32>
    %3 = vector.shape_cast %2 : vector<1x32x64xf32> to vector<32x64xf32>
    %cst = arith.constant dense<0.000000e+00> : vector<16x64xf32>
    %4 = tpu.matmul %1, %3, %cst {dimension_numbers = #tpu.dot_dimension_numbers<[1], [0], [0], [1], [0, 0, 1, 1], [], []>} : vector<16x32xf32>, vector<32x64xf32>, vector<16x64xf32> -> vector<16x64xf32>
    %c0_5 = arith.constant 0 : index
    %c0_6 = arith.constant 0 : index
    %5 = vector.load %arg4[%c0_5, %c0_6] : memref<64x8xf32, #tpu.memory_space<vmem>>, vector<64x8xf32>
    %c0_7 = arith.constant 0 : index
    %c0_8 = arith.constant 0 : index
    %6 = vector.load %arg5[%c0_7, %c0_8] : memref<64x8xf32, #tpu.memory_space<vmem>>, vector<64x8xf32>
    %c0_9 = arith.constant 0 : index
    %c0_10 = arith.constant 0 : index
    %7 = vector.load %arg6[%c0_9, %c0_10] : memref<16x128xf32, #tpu.memory_space<vmem>>, vector<16x128xf32>
    %8 = vector.extract_strided_slice %4 {offsets = [0, 0], sizes = [16, 32], strides = [1, 1]} : vector<16x64xf32> to vector<16x32xf32>
    %9 = vector.extract_strided_slice %4 {offsets = [0, 32], sizes = [16, 32], strides = [1, 1]} : vector<16x64xf32> to vector<16x32xf32>
    %10 = vector.extract_strided_slice %8 {offsets = [0, 0], sizes = [8, 32], strides = [1, 1]} : vector<16x32xf32> to vector<8x32xf32>
    %11 = vector.extract_strided_slice %8 {offsets = [8, 0], sizes = [8, 32], strides = [1, 1]} : vector<16x32xf32> to vector<8x32xf32>
    %12 = vector.extract_strided_slice %9 {offsets = [0, 0], sizes = [8, 32], strides = [1, 1]} : vector<16x32xf32> to vector<8x32xf32>
    %13 = vector.extract_strided_slice %9 {offsets = [8, 0], sizes = [8, 32], strides = [1, 1]} : vector<16x32xf32> to vector<8x32xf32>
    %14 = vector.extract_strided_slice %10 {offsets = [0, 0], sizes = [8, 8], strides = [1, 1]} : vector<8x32xf32> to vector<8x8xf32>
    %15 = vector.extract_strided_slice %12 {offsets = [0, 0], sizes = [8, 8], strides = [1, 1]} : vector<8x32xf32> to vector<8x8xf32>
    %cst_11 = arith.constant dense<0.000000e+00> : vector<8x8xf32>
    %16 = tpu.matmul %14, %15, %cst_11 {dimension_numbers = #tpu.dot_dimension_numbers<[1], [1], [0], [0], [0, 0, 1, 0], [], []>} : vector<8x8xf32>, vector<8x8xf32>, vector<8x8xf32> -> vector<8x8xf32>
    %cst_12 = arith.constant dense<0xFF800000> : vector<8xf32>
    %17 = vector.multi_reduction <maximumf>, %16, %cst_12 [1] : vector<8x8xf32> to vector<8xf32>
    %18 = vector.shape_cast %17 : vector<8xf32> to vector<8x1xf32>
    %19 = vector.broadcast %18 : vector<8x1xf32> to vector<8x8xf32>
    %20 = arith.subf %16, %19 : vector<8x8xf32>
    %21 = math.exp %20 : vector<8x8xf32>
    %cst_13 = arith.constant dense<0.000000e+00> : vector<8xf32>
    %22 = vector.multi_reduction <add>, %21, %cst_13 [1] : vector<8x8xf32> to vector<8xf32>
    %23 = vector.shape_cast %22 : vector<8xf32> to vector<8x1xf32>
    %24 = vector.broadcast %23 : vector<8x1xf32> to vector<8x8xf32>
    %25 = arith.divf %21, %24 : vector<8x8xf32>
    %26 = vector.extract_strided_slice %11 {offsets = [0, 0], sizes = [8, 8], strides = [1, 1]} : vector<8x32xf32> to vector<8x8xf32>
    %27 = vector.extract_strided_slice %13 {offsets = [0, 0], sizes = [8, 8], strides = [1, 1]} : vector<8x32xf32> to vector<8x8xf32>
    %cst_14 = arith.constant dense<0.000000e+00> : vector<8x8xf32>
    %28 = tpu.matmul %26, %27, %cst_14 {dimension_numbers = #tpu.dot_dimension_numbers<[1], [1], [0], [0], [0, 0, 1, 0], [], []>} : vector<8x8xf32>, vector<8x8xf32>, vector<8x8xf32> -> vector<8x8xf32>
    %cst_15 = arith.constant dense<0xFF800000> : vector<8xf32>
    %29 = vector.multi_reduction <maximumf>, %28, %cst_15 [1] : vector<8x8xf32> to vector<8xf32>
    %30 = vector.shape_cast %29 : vector<8xf32> to vector<8x1xf32>
    %31 = vector.broadcast %30 : vector<8x1xf32> to vector<8x8xf32>
    %32 = arith.subf %28, %31 : vector<8x8xf32>
    %33 = math.exp %32 : vector<8x8xf32>
    %cst_16 = arith.constant dense<0.000000e+00> : vector<8xf32>
    %34 = vector.multi_reduction <add>, %33, %cst_16 [1] : vector<8x8xf32> to vector<8xf32>
    %35 = vector.shape_cast %34 : vector<8xf32> to vector<8x1xf32>
    %36 = vector.broadcast %35 : vector<8x1xf32> to vector<8x8xf32>
    %37 = arith.divf %33, %36 : vector<8x8xf32>
    %cst_17 = arith.constant dense<0.000000e+00> : vector<64x8xf32>
    %38 = tpu.matmul %5, %25, %cst_17 {dimension_numbers = #tpu.dot_dimension_numbers<[1], [0], [0], [1], [0, 0, 1, 1], [], []>} : vector<64x8xf32>, vector<8x8xf32>, vector<64x8xf32> -> vector<64x8xf32>
    %cst_18 = arith.constant dense<0.000000e+00> : vector<64x8xf32>
    %39 = tpu.matmul %6, %37, %cst_18 {dimension_numbers = #tpu.dot_dimension_numbers<[1], [0], [0], [1], [0, 0, 1, 1], [], []>} : vector<64x8xf32>, vector<8x8xf32>, vector<64x8xf32> -> vector<64x8xf32>
    %40 = tpu.concatenate %38, %39 in 1 : vector<64x8xf32>, vector<64x8xf32> -> vector<64x16xf32>
    %cst_19 = arith.constant dense<0.000000e+00> : vector<64x128xf32>
    %41 = tpu.matmul %40, %7, %cst_19 {dimension_numbers = #tpu.dot_dimension_numbers<[1], [0], [0], [1], [0, 0, 1, 1], [], []>} : vector<64x16xf32>, vector<16x128xf32>, vector<64x128xf32> -> vector<64x128xf32>
    %c0_20 = arith.constant 0 : index
    %c0_21 = arith.constant 0 : index
    %c0_22 = arith.constant 0 : index
    %c0_23 = arith.constant 0 : index
    %c0_24 = arith.constant 0 : index
    %42 = vector.load %arg7[%c0_20, %c0_21, %c0_22, %c0_23, %c0_24] : memref<1x1x4x64x128xf32, #tpu.memory_space<vmem>>, vector<1x1x1x64x128xf32>
    %43 = vector.shape_cast %42 : vector<1x1x1x64x128xf32> to vector<64x128xf32>
    %44 = vector.shape_cast %41 : vector<64x128xf32> to vector<1x1x1x64x128xf32>
    tpu.vector_store %arg7[%c0_20, %c0_21, %c0_22, %c0_23, %c0_24], %44 {strides = array<i32>} : memref<1x1x4x64x128xf32, #tpu.memory_space<vmem>>, vector<1x1x1x64x128xf32>,
    %45 = vector.extract_strided_slice %10 {offsets = [0, 8], sizes = [8, 8], strides = [1, 1]} : vector<8x32xf32> to vector<8x8xf32>
    %46 = vector.extract_strided_slice %12 {offsets = [0, 8], sizes = [8, 8], strides = [1, 1]} : vector<8x32xf32> to vector<8x8xf32>
    %cst_25 = arith.constant dense<0.000000e+00> : vector<8x8xf32>
    %47 = tpu.matmul %45, %46, %cst_25 {dimension_numbers = #tpu.dot_dimension_numbers<[1], [1], [0], [0], [0, 0, 1, 0], [], []>} : vector<8x8xf32>, vector<8x8xf32>, vector<8x8xf32> -> vector<8x8xf32>
    %cst_26 = arith.constant dense<0xFF800000> : vector<8xf32>
    %48 = vector.multi_reduction <maximumf>, %47, %cst_26 [1] : vector<8x8xf32> to vector<8xf32>
    %49 = vector.shape_cast %48 : vector<8xf32> to vector<8x1xf32>
    %50 = vector.broadcast %49 : vector<8x1xf32> to vector<8x8xf32>
    %51 = arith.subf %47, %50 : vector<8x8xf32>
    %52 = math.exp %51 : vector<8x8xf32>
    %cst_27 = arith.constant dense<0.000000e+00> : vector<8xf32>
    %53 = vector.multi_reduction <add>, %52, %cst_27 [1] : vector<8x8xf32> to vector<8xf32>
    %54 = vector.shape_cast %53 : vector<8xf32> to vector<8x1xf32>
    %55 = vector.broadcast %54 : vector<8x1xf32> to vector<8x8xf32>
    %56 = arith.divf %52, %55 : vector<8x8xf32>
    %57 = vector.extract_strided_slice %11 {offsets = [0, 8], sizes = [8, 8], strides = [1, 1]} : vector<8x32xf32> to vector<8x8xf32>
    %58 = vector.extract_strided_slice %13 {offsets = [0, 8], sizes = [8, 8], strides = [1, 1]} : vector<8x32xf32> to vector<8x8xf32>
    %cst_28 = arith.constant dense<0.000000e+00> : vector<8x8xf32>
    %59 = tpu.matmul %57, %58, %cst_28 {dimension_numbers = #tpu.dot_dimension_numbers<[1], [1], [0], [0], [0, 0, 1, 0], [], []>} : vector<8x8xf32>, vector<8x8xf32>, vector<8x8xf32> -> vector<8x8xf32>
    %cst_29 = arith.constant dense<0xFF800000> : vector<8xf32>
    %60 = vector.multi_reduction <maximumf>, %59, %cst_29 [1] : vector<8x8xf32> to vector<8xf32>
    %61 = vector.shape_cast %60 : vector<8xf32> to vector<8x1xf32>
    %62 = vector.broadcast %61 : vector<8x1xf32> to vector<8x8xf32>
    %63 = arith.subf %59, %62 : vector<8x8xf32>
    %64 = math.exp %63 : vector<8x8xf32>
    %cst_30 = arith.constant dense<0.000000e+00> : vector<8xf32>
    %65 = vector.multi_reduction <add>, %64, %cst_30 [1] : vector<8x8xf32> to vector<8xf32>
    %66 = vector.shape_cast %65 : vector<8xf32> to vector<8x1xf32>
    %67 = vector.broadcast %66 : vector<8x1xf32> to vector<8x8xf32>
    %68 = arith.divf %64, %67 : vector<8x8xf32>
    %cst_31 = arith.constant dense<0.000000e+00> : vector<64x8xf32>
    %69 = tpu.matmul %5, %56, %cst_31 {dimension_numbers = #tpu.dot_dimension_numbers<[1], [0], [0], [1], [0, 0, 1, 1], [], []>} : vector<64x8xf32>, vector<8x8xf32>, vector<64x8xf32> -> vector<64x8xf32>
    %cst_32 = arith.constant dense<0.000000e+00> : vector<64x8xf32>
    %70 = tpu.matmul %6, %68, %cst_32 {dimension_numbers = #tpu.dot_dimension_numbers<[1], [0], [0], [1], [0, 0, 1, 1], [], []>} : vector<64x8xf32>, vector<8x8xf32>, vector<64x8xf32> -> vector<64x8xf32>
    %71 = tpu.concatenate %69, %70 in 1 : vector<64x8xf32>, vector<64x8xf32> -> vector<64x16xf32>
    %cst_33 = arith.constant dense<0.000000e+00> : vector<64x128xf32>
    %72 = tpu.matmul %71, %7, %cst_33 {dimension_numbers = #tpu.dot_dimension_numbers<[1], [0], [0], [1], [0, 0, 1, 1], [], []>} : vector<64x16xf32>, vector<16x128xf32>, vector<64x128xf32> -> vector<64x128xf32>
    %c0_34 = arith.constant 0 : index
    %c0_35 = arith.constant 0 : index
    %c1 = arith.constant 1 : index
    %c0_36 = arith.constant 0 : index
    %c0_37 = arith.constant 0 : index
    %73 = vector.load %arg7[%c0_34, %c0_35, %c1, %c0_36, %c0_37] : memref<1x1x4x64x128xf32, #tpu.memory_space<vmem>>, vector<1x1x1x64x128xf32>
    %74 = vector.shape_cast %73 : vector<1x1x1x64x128xf32> to vector<64x128xf32>
    %75 = vector.shape_cast %72 : vector<64x128xf32> to vector<1x1x1x64x128xf32>
    tpu.vector_store %arg7[%c0_34, %c0_35, %c1, %c0_36, %c0_37], %75 {strides = array<i32>} : memref<1x1x4x64x128xf32, #tpu.memory_space<vmem>>, vector<1x1x1x64x128xf32>,
    %76 = vector.extract_strided_slice %10 {offsets = [0, 16], sizes = [8, 8], strides = [1, 1]} : vector<8x32xf32> to vector<8x8xf32>
    %77 = vector.extract_strided_slice %12 {offsets = [0, 16], sizes = [8, 8], strides = [1, 1]} : vector<8x32xf32> to vector<8x8xf32>
    %cst_38 = arith.constant dense<0.000000e+00> : vector<8x8xf32>
    %78 = tpu.matmul %76, %77, %cst_38 {dimension_numbers = #tpu.dot_dimension_numbers<[1], [1], [0], [0], [0, 0, 1, 0], [], []>} : vector<8x8xf32>, vector<8x8xf32>, vector<8x8xf32> -> vector<8x8xf32>
    %cst_39 = arith.constant dense<0xFF800000> : vector<8xf32>
    %79 = vector.multi_reduction <maximumf>, %78, %cst_39 [1] : vector<8x8xf32> to vector<8xf32>
    %80 = vector.shape_cast %79 : vector<8xf32> to vector<8x1xf32>
    %81 = vector.broadcast %80 : vector<8x1xf32> to vector<8x8xf32>
    %82 = arith.subf %78, %81 : vector<8x8xf32>
    %83 = math.exp %82 : vector<8x8xf32>
    %cst_40 = arith.constant dense<0.000000e+00> : vector<8xf32>
    %84 = vector.multi_reduction <add>, %83, %cst_40 [1] : vector<8x8xf32> to vector<8xf32>
    %85 = vector.shape_cast %84 : vector<8xf32> to vector<8x1xf32>
    %86 = vector.broadcast %85 : vector<8x1xf32> to vector<8x8xf32>
    %87 = arith.divf %83, %86 : vector<8x8xf32>
    %88 = vector.extract_strided_slice %11 {offsets = [0, 16], sizes = [8, 8], strides = [1, 1]} : vector<8x32xf32> to vector<8x8xf32>
    %89 = vector.extract_strided_slice %13 {offsets = [0, 16], sizes = [8, 8], strides = [1, 1]} : vector<8x32xf32> to vector<8x8xf32>
    %cst_41 = arith.constant dense<0.000000e+00> : vector<8x8xf32>
    %90 = tpu.matmul %88, %89, %cst_41 {dimension_numbers = #tpu.dot_dimension_numbers<[1], [1], [0], [0], [0, 0, 1, 0], [], []>} : vector<8x8xf32>, vector<8x8xf32>, vector<8x8xf32> -> vector<8x8xf32>
    %cst_42 = arith.constant dense<0xFF800000> : vector<8xf32>
    %91 = vector.multi_reduction <maximumf>, %90, %cst_42 [1] : vector<8x8xf32> to vector<8xf32>
    %92 = vector.shape_cast %91 : vector<8xf32> to vector<8x1xf32>
    %93 = vector.broadcast %92 : vector<8x1xf32> to vector<8x8xf32>
    %94 = arith.subf %90, %93 : vector<8x8xf32>
    %95 = math.exp %94 : vector<8x8xf32>
    %cst_43 = arith.constant dense<0.000000e+00> : vector<8xf32>
    %96 = vector.multi_reduction <add>, %95, %cst_43 [1] : vector<8x8xf32> to vector<8xf32>
    %97 = vector.shape_cast %96 : vector<8xf32> to vector<8x1xf32>
    %98 = vector.broadcast %97 : vector<8x1xf32> to vector<8x8xf32>
    %99 = arith.divf %95, %98 : vector<8x8xf32>
    %cst_44 = arith.constant dense<0.000000e+00> : vector<64x8xf32>
    %100 = tpu.matmul %5, %87, %cst_44 {dimension_numbers = #tpu.dot_dimension_numbers<[1], [0], [0], [1], [0, 0, 1, 1], [], []>} : vector<64x8xf32>, vector<8x8xf32>, vector<64x8xf32> -> vector<64x8xf32>
    %cst_45 = arith.constant dense<0.000000e+00> : vector<64x8xf32>
    %101 = tpu.matmul %6, %99, %cst_45 {dimension_numbers = #tpu.dot_dimension_numbers<[1], [0], [0], [1], [0, 0, 1, 1], [], []>} : vector<64x8xf32>, vector<8x8xf32>, vector<64x8xf32> -> vector<64x8xf32>
    %102 = tpu.concatenate %100, %101 in 1 : vector<64x8xf32>, vector<64x8xf32> -> vector<64x16xf32>
    %cst_46 = arith.constant dense<0.000000e+00> : vector<64x128xf32>
    %103 = tpu.matmul %102, %7, %cst_46 {dimension_numbers = #tpu.dot_dimension_numbers<[1], [0], [0], [1], [0, 0, 1, 1], [], []>} : vector<64x16xf32>, vector<16x128xf32>, vector<64x128xf32> -> vector<64x128xf32>
    %c0_47 = arith.constant 0 : index
    %c0_48 = arith.constant 0 : index
    %c2 = arith.constant 2 : index
    %c0_49 = arith.constant 0 : index
    %c0_50 = arith.constant 0 : index
    %104 = vector.load %arg7[%c0_47, %c0_48, %c2, %c0_49, %c0_50] : memref<1x1x4x64x128xf32, #tpu.memory_space<vmem>>, vector<1x1x1x64x128xf32>
    %105 = vector.shape_cast %104 : vector<1x1x1x64x128xf32> to vector<64x128xf32>
    %106 = vector.shape_cast %103 : vector<64x128xf32> to vector<1x1x1x64x128xf32>
    tpu.vector_store %arg7[%c0_47, %c0_48, %c2, %c0_49, %c0_50], %106 {strides = array<i32>} : memref<1x1x4x64x128xf32, #tpu.memory_space<vmem>>, vector<1x1x1x64x128xf32>,
    %107 = vector.extract_strided_slice %10 {offsets = [0, 24], sizes = [8, 8], strides = [1, 1]} : vector<8x32xf32> to vector<8x8xf32>
    %108 = vector.extract_strided_slice %12 {offsets = [0, 24], sizes = [8, 8], strides = [1, 1]} : vector<8x32xf32> to vector<8x8xf32>
    %cst_51 = arith.constant dense<0.000000e+00> : vector<8x8xf32>
    %109 = tpu.matmul %107, %108, %cst_51 {dimension_numbers = #tpu.dot_dimension_numbers<[1], [1], [0], [0], [0, 0, 1, 0], [], []>} : vector<8x8xf32>, vector<8x8xf32>, vector<8x8xf32> -> vector<8x8xf32>
    %cst_52 = arith.constant dense<0xFF800000> : vector<8xf32>
    %110 = vector.multi_reduction <maximumf>, %109, %cst_52 [1] : vector<8x8xf32> to vector<8xf32>
    %111 = vector.shape_cast %110 : vector<8xf32> to vector<8x1xf32>
    %112 = vector.broadcast %111 : vector<8x1xf32> to vector<8x8xf32>
    %113 = arith.subf %109, %112 : vector<8x8xf32>
    %114 = math.exp %113 : vector<8x8xf32>
    %cst_53 = arith.constant dense<0.000000e+00> : vector<8xf32>
    %115 = vector.multi_reduction <add>, %114, %cst_53 [1] : vector<8x8xf32> to vector<8xf32>
    %116 = vector.shape_cast %115 : vector<8xf32> to vector<8x1xf32>
    %117 = vector.broadcast %116 : vector<8x1xf32> to vector<8x8xf32>
    %118 = arith.divf %114, %117 : vector<8x8xf32>
    %119 = vector.extract_strided_slice %11 {offsets = [0, 24], sizes = [8, 8], strides = [1, 1]} : vector<8x32xf32> to vector<8x8xf32>
    %120 = vector.extract_strided_slice %13 {offsets = [0, 24], sizes = [8, 8], strides = [1, 1]} : vector<8x32xf32> to vector<8x8xf32>
    %cst_54 = arith.constant dense<0.000000e+00> : vector<8x8xf32>
    %121 = tpu.matmul %119, %120, %cst_54 {dimension_numbers = #tpu.dot_dimension_numbers<[1], [1], [0], [0], [0, 0, 1, 0], [], []>} : vector<8x8xf32>, vector<8x8xf32>, vector<8x8xf32> -> vector<8x8xf32>
    %cst_55 = arith.constant dense<0xFF800000> : vector<8xf32>
    %122 = vector.multi_reduction <maximumf>, %121, %cst_55 [1] : vector<8x8xf32> to vector<8xf32>
    %123 = vector.shape_cast %122 : vector<8xf32> to vector<8x1xf32>
    %124 = vector.broadcast %123 : vector<8x1xf32> to vector<8x8xf32>
    %125 = arith.subf %121, %124 : vector<8x8xf32>
    %126 = math.exp %125 : vector<8x8xf32>
    %cst_56 = arith.constant dense<0.000000e+00> : vector<8xf32>
    %127 = vector.multi_reduction <add>, %126, %cst_56 [1] : vector<8x8xf32> to vector<8xf32>
    %128 = vector.shape_cast %127 : vector<8xf32> to vector<8x1xf32>
    %129 = vector.broadcast %128 : vector<8x1xf32> to vector<8x8xf32>
    %130 = arith.divf %126, %129 : vector<8x8xf32>
    %cst_57 = arith.constant dense<0.000000e+00> : vector<64x8xf32>
    %131 = tpu.matmul %5, %118, %cst_57 {dimension_numbers = #tpu.dot_dimension_numbers<[1], [0], [0], [1], [0, 0, 1, 1], [], []>} : vector<64x8xf32>, vector<8x8xf32>, vector<64x8xf32> -> vector<64x8xf32>
    %cst_58 = arith.constant dense<0.000000e+00> : vector<64x8xf32>
    %132 = tpu.matmul %6, %130, %cst_58 {dimension_numbers = #tpu.dot_dimension_numbers<[1], [0], [0], [1], [0, 0, 1, 1], [], []>} : vector<64x8xf32>, vector<8x8xf32>, vector<64x8xf32> -> vector<64x8xf32>
    %133 = tpu.concatenate %131, %132 in 1 : vector<64x8xf32>, vector<64x8xf32> -> vector<64x16xf32>
    %cst_59 = arith.constant dense<0.000000e+00> : vector<64x128xf32>
    %134 = tpu.matmul %133, %7, %cst_59 {dimension_numbers = #tpu.dot_dimension_numbers<[1], [0], [0], [1], [0, 0, 1, 1], [], []>} : vector<64x16xf32>, vector<16x128xf32>, vector<64x128xf32> -> vector<64x128xf32>
    %c0_60 = arith.constant 0 : index
    %c0_61 = arith.constant 0 : index
    %c3 = arith.constant 3 : index
    %c0_62 = arith.constant 0 : index
    %c0_63 = arith.constant 0 : index
    %135 = vector.load %arg7[%c0_60, %c0_61, %c3, %c0_62, %c0_63] : memref<1x1x4x64x128xf32, #tpu.memory_space<vmem>>, vector<1x1x1x64x128xf32>
    %136 = vector.shape_cast %135 : vector<1x1x1x64x128xf32> to vector<64x128xf32>
    %137 = vector.shape_cast %134 : vector<64x128xf32> to vector<1x1x1x64x128xf32>
    tpu.vector_store %arg7[%c0_60, %c0_61, %c3, %c0_62, %c0_63], %137 {strides = array<i32>} : memref<1x1x4x64x128xf32, #tpu.memory_space<vmem>>, vector<1x1x1x64x128xf32>,
    return
  }
  func.func @transform_0(%arg0: i32, %arg1: i32) -> (i32, i32, i32) {
    %c0_i32 = arith.constant 0 : i32
    %c0_i32_0 = arith.constant 0 : i32
    %c0_i32_1 = arith.constant 0 : i32
    return %arg1, %c0_i32, %c0_i32_0 : i32, i32, i32
  }
  func.func @transform_1(%arg0: i32, %arg1: i32) -> (i32, i32, i32) {
    %c0_i32 = arith.constant 0 : i32
    %c0_i32_0 = arith.constant 0 : i32
    %c0_i32_1 = arith.constant 0 : i32
    return %arg0, %c0_i32, %c0_i32_0 : i32, i32, i32
  }
  func.func @transform_2(%arg0: i32, %arg1: i32) -> (i32, i32) {
    %c0_i32 = arith.constant 0 : i32
    %c0_i32_0 = arith.constant 0 : i32
    %c0_i32_1 = arith.constant 0 : i32
    return %c0_i32, %c0_i32_0 : i32, i32
  }
  func.func @transform_3(%arg0: i32, %arg1: i32) -> (i32, i32) {
    %c0_i32 = arith.constant 0 : i32
    %c0_i32_0 = arith.constant 0 : i32
    %c0_i32_1 = arith.constant 0 : i32
    return %c0_i32, %c0_i32_0 : i32, i32
  }
  func.func @transform_4(%arg0: i32, %arg1: i32) -> (i32, i32) {
    %c0_i32 = arith.constant 0 : i32
    %c0_i32_0 = arith.constant 0 : i32
    %c0_i32_1 = arith.constant 0 : i32
    return %c0_i32, %c0_i32_0 : i32, i32
  }
  func.func @transform_5(%arg0: i32, %arg1: i32) -> (i32, i32, i32, i32, i32) {
    %c0_i32 = arith.constant 0 : i32
    %c0_i32_0 = arith.constant 0 : i32
    %c0_i32_1 = arith.constant 0 : i32
    %c0_i32_2 = arith.constant 0 : i32
    return %arg0, %arg1, %c0_i32, %c0_i32_0, %c0_i32_1 : i32, i32, i32, i32, i32
  }
}

</mosaic_0001>

<llo_original>
// kernel: run.1
$region0: #{run.1}
  #allocation0 [shape = 'u32[]', space=smem, size = 0x4, offset = 0x4, fixed_abs, tag = 'smem constant byte address 0x4 - core index']
  #allocation1 [shape = 'u32[144,128]{1,0:T(1,128)}', space=vmem, size = 0x12000, scoped, tag = 'internal scratch']
  %s0 = inlined_call_operand.vmem [shape: f32[2,16,32], index: 0, kind: input, shape index: {}]
  %s1 = inlined_call_operand.vmem [shape: f32[2,32,64], index: 1, kind: input, shape index: {}]
  %s2 = inlined_call_operand.vmem [shape: f32[64,8], index: 2, kind: input, shape index: {}, may-alias: {2,3}]
  %s3 = inlined_call_operand.vmem [shape: f32[64,8], index: 3, kind: input, shape index: {}, may-alias: {2,3}]
  %s4 = inlined_call_operand.vmem [shape: f32[16,128], index: 4, kind: input, shape index: {}]
  %s5 = inlined_call_operand.vmem [shape: f32[2,2,4,64,128], index: 5, kind: output, shape index: {}]
  %s6 = sld [smem:[#allocation0]]
  $region53: #{run.1} parent=0
    _
  %s8 = ssub.s32 1, %s6
  %s9 = scalar_select 0, %s8, %s6
  loop: start=0, step=1, limit=6
  $region2: #{run.1} parent=0 // loop_pre_header
    _
  $region3: #{run.1} parent=0 // loop_header
    %s11 = sphi 0, %s15
    %p12 = scmp.ge.s32.totalorder %s11, 6
    %s18 = sphi 0, %s30
    %s19 = sphi 0, %s26
    %s20 = sphi 0, %s18
    %s21 = sphi 0, %s19
    %s22 = sphi 0, %s20
    %s23 = sphi 0, %s21
    %s33 = sphi 0, %s35
    %s36 = sphi 0, %s33
    %s37 = sphi 0, %s36
    %s53 = sphi 0, %s37
    %s59 = sphi 0, %s61
    %s62 = sphi 0, %s59
    %s63 = sphi 0, %s62
    %s79 = sphi 0, %s63
    %s83 = sphi 0, %s83
    %s85 = sphi 0, %s83
    %s86 = sphi 0, %s85
    %s100 = sphi 0, %s86
    %s104 = sphi 0, %s104
    %s106 = sphi 0, %s104
    %s107 = sphi 0, %s106
    %s121 = sphi 0, %s107
    %s125 = sphi 0, %s125
    %s127 = sphi 0, %s125
    %s128 = sphi 0, %s127
    %s142 = sphi 0, %s128
    %s150 = sphi 0, %s152
    %s153 = sphi 0, %s150
    %s154 = sphi 0, %s153
    %s170 = sphi 0, %s154
  $region4: #{run.1} parent=0 // loop_header_branch
    %14 = sbr.rel (%p12) target = $region8
  $region5: #{run.1} parent=0 // loop_body
    %s16 = ssub.s32 %s11, 1
    %s17 = ssub.s32 %s11, 2
    %s24 = sadd.s32 1, %s19
    %p25 = scmp.ge.s32.totalorder %s24, 2
    %s26 = scalar_select %p25, 0, %s24
    %s27 = sadd.s32 1, %s18
    %s28 = scalar_select %p25, %s27, %s18
    %p29 = scmp.ge.s32.totalorder %s28, 2
    %s30 = scalar_select %p29, 0, %s28
    %s31 = ssub.s32 %s19, %s26
    %p32 = scmp.eq.s32.totalorder %s31, 0
    %s34 = sadd.s32 %s33, 1
    %s35 = scalar_select %p32, %s33, %s34
    %p38 = pneg %p32
    %p39 = scmp.eq.s32.totalorder %s11, 3
    %p40 = por %p38, %p39
    %p41 = scmp.ne.s32.totalorder %s33, %s36
    %p42 = scmp.eq.s32.totalorder %s11, 0
    %p43 = por %p41, %p42
    %p44 = scmp.ne.s32.totalorder %s33, %s36
    %p45 = scmp.eq.s32.totalorder %s16, 3
    %p46 = por %p44, %p45
    %p47 = scmp.ne.s32.totalorder %s36, %s37
    %p48 = scmp.eq.s32.totalorder %s16, 0
    %p49 = por %p47, %p48
    %p50 = scmp.ne.s32.totalorder %s36, %s37
    %p51 = scmp.eq.s32.totalorder %s17, 3
    %p52 = por %p50, %p51
    %p54 = scmp.ne.s32.totalorder %s37, %s53
    %p55 = scmp.eq.s32.totalorder %s17, 0
    %p56 = por %p54, %p55
    %s57 = ssub.s32 %s18, %s30
    %p58 = scmp.eq.s32.totalorder %s57, 0
    %s60 = sadd.s32 %s59, 1
    %s61 = scalar_select %p58, %s59, %s60
    %p64 = pneg %p58
    %p65 = scmp.eq.s32.totalorder %s11, 3
    %p66 = por %p64, %p65
    %p67 = scmp.ne.s32.totalorder %s59, %s62
    %p68 = scmp.eq.s32.totalorder %s11, 0
    %p69 = por %p67, %p68
    %p70 = scmp.ne.s32.totalorder %s59, %s62
    %p71 = scmp.eq.s32.totalorder %s16, 3
    %p72 = por %p70, %p71
    %p73 = scmp.ne.s32.totalorder %s62, %s63
    %p74 = scmp.eq.s32.totalorder %s16, 0
    %p75 = por %p73, %p74
    %p76 = scmp.ne.s32.totalorder %s62, %s63
    %p77 = scmp.eq.s32.totalorder %s17, 3
    %p78 = por %p76, %p77
    %p80 = scmp.ne.s32.totalorder %s63, %s79
    %p81 = scmp.eq.s32.totalorder %s17, 0
    %p82 = por %p80, %p81
    %s84 = sadd.s32 %s83, 1
    %p87 = scmp.eq.s32.totalorder %s11, 3
    %p88 = scmp.ne.s32.totalorder %s83, %s85
    %p89 = scmp.eq.s32.totalorder %s11, 0
    %p90 = por %p88, %p89
    %p91 = scmp.ne.s32.totalorder %s83, %s85
    %p92 = scmp.eq.s32.totalorder %s16, 3
    %p93 = por %p91, %p92
    %p94 = scmp.ne.s32.totalorder %s85, %s86
    %p95 = scmp.eq.s32.totalorder %s16, 0
    %p96 = por %p94, %p95
    %p97 = scmp.ne.s32.totalorder %s85, %s86
    %p98 = scmp.eq.s32.totalorder %s17, 3
    %p99 = por %p97, %p98
    %p101 = scmp.ne.s32.totalorder %s86, %s100
    %p102 = scmp.eq.s32.totalorder %s17, 0
    %p103 = por %p101, %p102
    %s105 = sadd.s32 %s104, 1
    %p108 = scmp.eq.s32.totalorder %s11, 3
    %p109 = scmp.ne.s32.totalorder %s104, %s106
    %p110 = scmp.eq.s32.totalorder %s11, 0
    %p111 = por %p109, %p110
    %p112 = scmp.ne.s32.totalorder %s104, %s106
    %p113 = scmp.eq.s32.totalorder %s16, 3
    %p114 = por %p112, %p113
    %p115 = scmp.ne.s32.totalorder %s106, %s107
    %p116 = scmp.eq.s32.totalorder %s16, 0
    %p117 = por %p115, %p116
    %p118 = scmp.ne.s32.totalorder %s106, %s107
    %p119 = scmp.eq.s32.totalorder %s17, 3
    %p120 = por %p118, %p119
    %p122 = scmp.ne.s32.totalorder %s107, %s121
    %p123 = scmp.eq.s32.totalorder %s17, 0
    %p124 = por %p122, %p123
    %s126 = sadd.s32 %s125, 1
    %p129 = scmp.eq.s32.totalorder %s11, 3
    %p130 = scmp.ne.s32.totalorder %s125, %s127
    %p131 = scmp.eq.s32.totalorder %s11, 0
    %p132 = por %p130, %p131
    %p133 = scmp.ne.s32.totalorder %s125, %s127
    %p134 = scmp.eq.s32.totalorder %s16, 3
    %p135 = por %p133, %p134
    %p136 = scmp.ne.s32.totalorder %s127, %s128
    %p137 = scmp.eq.s32.totalorder %s16, 0
    %p138 = por %p136, %p137
    %p139 = scmp.ne.s32.totalorder %s127, %s128
    %p140 = scmp.eq.s32.totalorder %s17, 3
    %p141 = por %p139, %p140
    %p143 = scmp.ne.s32.totalorder %s128, %s142
    %p144 = scmp.eq.s32.totalorder %s17, 0
    %p145 = por %p143, %p144
    %s146 = ssub.s32 %s18, %s30
    %s147 = ssub.s32 %s19, %s26
    %s148 = sor.u32 %s146, %s147
    %p149 = scmp.eq.s32.totalorder %s148, 0
    %s151 = sadd.s32 %s150, 1
    %s152 = scalar_select %p149, %s150, %s151
    %p155 = pneg %p149
    %p156 = scmp.eq.s32.totalorder %s11, 3
    %p157 = por %p155, %p156
    %p158 = scmp.ne.s32.totalorder %s150, %s153
    %p159 = scmp.eq.s32.totalorder %s11, 0
    %p160 = por %p158, %p159
    %p161 = scmp.ne.s32.totalorder %s150, %s153
    %p162 = scmp.eq.s32.totalorder %s16, 3
    %p163 = por %p161, %p162
    %p164 = scmp.ne.s32.totalorder %s153, %s154
    %p165 = scmp.eq.s32.totalorder %s16, 0
    %p166 = por %p164, %p165
    %p167 = scmp.ne.s32.totalorder %s153, %s154
    %p168 = scmp.eq.s32.totalorder %s17, 3
    %p169 = por %p167, %p168
    %p171 = scmp.ne.s32.totalorder %s154, %s170
    %p172 = scmp.eq.s32.totalorder %s17, 0
    %p173 = por %p171, %p172
    %p174 = scmp.le.s32.totalorder 1, %s11
    %p175 = scmp.lt.s32.totalorder %s11, 5
    %p176 = pnand %p174, %p175
    %p177 = pneg %p176
    // Predicated region
    $region9: #{run.1} parent=5 // pred_check
      _
    $region10: #{run.1} parent=5 // pred_check_branch
      %179 = sbr.rel (%p176) target = $region12
    $region11: #{run.1} parent=5 // pred_region
      %s180 = ssub.s32 %s11, 1
      // Predicated region
      $region13: #{run.1} parent=11 // pred_check
        %p181 = pneg %p96
      $region14: #{run.1} parent=11 // pred_check_branch
        %183 = sbr.rel (%p181) target = $region16
      $region15: #{run.1} parent=11 // pred_region
        _
      $region16: #{run.1} parent=11 // pred_fallthru
        _
      // Predicated region
      $region17: #{run.1} parent=11 // pred_check
        %p184 = pneg %p117
      $region18: #{run.1} parent=11 // pred_check_branch
        %186 = sbr.rel (%p184) target = $region20
      $region19: #{run.1} parent=11 // pred_region
        _
      $region20: #{run.1} parent=11 // pred_fallthru
        _
      // Predicated region
      $region21: #{run.1} parent=11 // pred_check
        %p187 = pneg %p138
      $region22: #{run.1} parent=11 // pred_check_branch
        %189 = sbr.rel (%p187) target = $region24
      $region23: #{run.1} parent=11 // pred_region
        _
      $region24: #{run.1} parent=11 // pred_fallthru
        _
    $region12: #{run.1} parent=5 // pred_fallthru
      _
    %p190 = scmp.lt.s32.totalorder %s11, 4
    // Predicated region
    $region25: #{run.1} parent=5 // pred_check
      %p191 = pneg %p190
    $region26: #{run.1} parent=5 // pred_check_branch
      %193 = sbr.rel (%p191) target = $region28
    $region27: #{run.1} parent=5 // pred_region
      // Predicated region
      $region29: #{run.1} parent=27 // pred_check
        %p194 = pneg %p43
      $region30: #{run.1} parent=27 // pred_check_branch
        %196 = sbr.rel (%p194) target = $region32
      $region31: #{run.1} parent=27 // pred_region
        %p197 = scmp.lt.s32.totalorder %s19, 1
        %s198 = scalar_select %p197, %s19, 1
        %s199 = smul.addr %s198, 2
        %s200 = smul.addr %s199, 8
        %s201 = scalar_lea.vmem %s0, %s200
      $region32: #{run.1} parent=27 // pred_fallthru
        _
      // Predicated region
      $region33: #{run.1} parent=27 // pred_check
        %p202 = pneg %p69
      $region34: #{run.1} parent=27 // pred_check_branch
        %204 = sbr.rel (%p202) target = $region36
      $region35: #{run.1} parent=27 // pred_region
        %p205 = scmp.lt.s32.totalorder %s18, 1
        %s206 = scalar_select %p205, %s18, 1
        %s207 = smul.addr %s206, 4
        %s208 = smul.addr %s207, 8
        %s209 = scalar_lea.vmem %s1, %s208
      $region36: #{run.1} parent=27 // pred_fallthru
        _
    $region28: #{run.1} parent=5 // pred_fallthru
      _
    %p210 = scmp.le.s32.totalorder 1, %s11
    %p211 = scmp.lt.s32.totalorder %s11, 5
    %p212 = pnand %p210, %p211
    %p213 = pneg %p212
    // Predicated region
    $region37: #{run.1} parent=5 // pred_check
      _
    $region38: #{run.1} parent=5 // pred_check_branch
      %215 = sbr.rel (%p212) target = $region40
    $region39: #{run.1} parent=5 // pred_region
      %s216 = ssub.s32 %s11, 1
      %p217 = scmp.lt.s32.totalorder %s21, 1
      %s218 = scalar_select %p217, %s21, 1
      %s219 = smul.addr %s218, 2
      %s220 = smul.addr %s219, 8
      %s221 = scalar_lea.vmem %s0, %s220
      %p222 = pneg %p49
      %p223 = pneg %p46
      %p224 = scmp.lt.s32.totalorder %s20, 1
      %s225 = scalar_select %p224, %s20, 1
      %s226 = smul.addr %s225, 4
      %s227 = smul.addr %s226, 8
      %s228 = scalar_lea.vmem %s1, %s227
      %p229 = pneg %p75
      %p230 = pneg %p72
      %p231 = pneg %p96
      %p232 = pneg %p93
      %p233 = pneg %p117
      %p234 = pneg %p114
      %p235 = pneg %p138
      %p236 = pneg %p135
      %p237 = pneg %p166
      %p238 = pneg %p163
      %p239 = scmp.lt.s32.totalorder %s20, 1
      %s240 = scalar_select %p239, %s20, 1
      %p241 = scmp.lt.s32.totalorder %s21, 1
      %s242 = scalar_select %p241, %s21, 1
      %s243 = smul.addr %s242, 32
      %s244 = smul.addr %s240, 64
      %s245 = sadd.s32 %s243, %s244
      %s246 = smul.addr %s245, 8
      %s247 = scalar_lea.vmem %s5, %s246
      %p248 = scmp.lt.s32.totalorder %s21, 1
      %s249 = scalar_select %p248, %s21, 1
      %s250 = smul.addr %s249, 2
      %s251 = smul.addr %s250, 8
      %s252 = scalar_lea.vmem %s0, %s251
      %p253 = scmp.lt.s32.totalorder %s20, 1
      %s254 = scalar_select %p253, %s20, 1
      %s255 = smul.addr %s254, 4
      %s256 = smul.addr %s255, 8
      %s257 = scalar_lea.vmem %s1, %s256
      %p258 = scmp.lt.s32.totalorder %s20, 1
      %s259 = scalar_select %p258, %s20, 1
      %p260 = scmp.lt.s32.totalorder %s21, 1
      %s261 = scalar_select %p260, %s21, 1
      %s262 = smul.addr %s261, 32
      %s263 = smul.addr %s259, 64
      %s264 = sadd.s32 %s262, %s263
      %s265 = smul.addr %s264, 8
      %s266 = scalar_lea.vmem %s5, %s265
      %v267 = vld [vmem:[%s252] sm:$0xff]
      %v268 = vld [vmem:[%s252 + $0x8] sm:$0xff]
      %v269 = vld [vmem:[%s257] sm:$0xff]
      %v270 = vld [vmem:[%s257 + $0x8] sm:$0xff]
      %v271 = vld [vmem:[%s257 + $0x10] sm:$0xff]
      %v272 = vld [vmem:[%s257 + $0x18] sm:$0xff]
      %vm273 = vcmask 261120
      %v275 = vsel %vm273, %v267, 0
      %v278 = vsel %vm273, %v268, 0
      %280 = vmatprep.subr.mxu0 0.0
      %281 = vmatpush1.msra.mxu0 %v269
      %282 = vmatprep.subr.mxu0 0.0
      %283 = vmatpush1.msra.mxu0 %v270
      %284 = vmatprep.subr.mxu0 0.0
      %285 = vmatpush1.msra.mxu0 %v271
      %286 = vmatprep.subr.mxu0 0.0
      %287 = vmatpush1.msra.mxu0 %v272
      %288 = vmatprep.subr.mxu0 0.0
      %289 = vmatpush1.msra.mxu0 0.0
      %290 = vmatprep.subr.mxu0 0.0
      %291 = vmatpush1.msra.mxu0 0.0
      %292 = vmatprep.subr.mxu0 0.0
      %293 = vmatpush1.msra.mxu0 0.0
      %294 = vmatprep.subr.mxu0 0.0
      %295 = vmatpush1.msra.mxu0 0.0
      %296 = vmatprep.subr.mxu0 0.0
      %297 = vmatpush1.msra.mxu0 0.0
      %298 = vmatprep.subr.mxu0 0.0
      %299 = vmatpush1.msra.mxu0 0.0
      %300 = vmatprep.subr.mxu0 0.0
      %301 = vmatpush1.msra.mxu0 0.0
      %302 = vmatprep.subr.mxu0 0.0
      %303 = vmatpush1.msra.mxu0 0.0
      %304 = vmatprep.subr.mxu0 0.0
      %305 = vmatpush1.msra.mxu0 0.0
      %306 = vmatprep.subr.mxu0 0.0
      %307 = vmatpush1.msra.mxu0 0.0
      %308 = vmatprep.subr.mxu0 0.0
      %309 = vmatpush1.msra.mxu0 0.0
      %310 = vmatprep.subr.mxu0 0.0
      %311 = vmatpush1.msra.mxu0 0.0
      %312 = vmatprep.subr.mxu0 0.0
      %313 = vmatpush1.msra.mxu0 0.0
      %314 = vmatprep.subr.mxu0 0.0
      %315 = vmatpush1.msra.mxu0 0.0
      %316 = vmatprep.subr.mxu0 0.0
      %317 = vmatpush1.msra.mxu0 0.0
      %318 = vmatprep.subr.mxu0 0.0
      %319 = vmatpush1.msra.mxu0 0.0
      %320 = vmatprep.subr.mxu0 0.0
      %321 = vmatpush1.msra.mxu0 0.0
      %322 = vmatprep.subr.mxu0 0.0
      %323 = vmatpush1.msra.mxu0 0.0
      %324 = vmatprep.subr.mxu0 0.0
      %325 = vmatpush1.msra.mxu0 0.0
      %326 = vmatprep.subr.mxu0 0.0
      %327 = vmatpush1.msra.mxu0 0.0
      %328 = vmatprep.subr.mxu0 0.0
      %329 = vmatpush1.msra.mxu0 0.0
      %330 = vmatprep.subr.mxu0 0.0
      %331 = vmatpush1.msra.mxu0 0.0
      %332 = vmatprep.subr.mxu0 0.0
      %333 = vmatpush1.msra.mxu0 0.0
      %334 = vmatprep.subr.mxu0 0.0
      %335 = vmatpush1.msra.mxu0 0.0
      %336 = vmatprep.subr.mxu0 0.0
      %337 = vmatpush1.msra.mxu0 0.0
      %338 = vmatprep.subr.mxu0 0.0
      %339 = vmatpush1.msra.mxu0 0.0
      %340 = vmatprep.subr.mxu0 0.0
      %341 = vmatpush1.msra.mxu0 0.0
      %342 = vmatprep.subr.mxu0 0.0
      %343 = vmatpush1.msra.mxu0 0.0
      %344 = vmatprep.mubr.f32.mxu0 0.0
      %345 = vmatmul.mubr.f32.gmra.mrb[0].mxu0 %v275
      %v346 = vpop.f32.mrb[0].mxu0
      %v347 = vadd.f32 0.0, %v346
      %v348 = vpop.f32.mrb[0].mxu0
      %349 = vmatprep.mubr.f32.mxu0 0.0
      %350 = vmatmul.mubr.f32.gmra.mrb[0].mxu0 %v278
      %v351 = vpop.f32.mrb[0].mxu0
      %v352 = vadd.f32 0.0, %v351
      %v353 = vpop.f32.mrb[0].mxu0
      %354 = vdwg.mxu0
      %v355 = vld [vmem:[%s2] sm:$0xff]
      %v356 = vld [vmem:[%s2 + $0x8] sm:$0xff]
      %v357 = vld [vmem:[%s2 + $0x10] sm:$0xff]
      %v358 = vld [vmem:[%s2 + $0x18] sm:$0xff]
      %v359 = vld [vmem:[%s2 + $0x20] sm:$0xff]
      %v360 = vld [vmem:[%s2 + $0x28] sm:$0xff]
      %v361 = vld [vmem:[%s2 + $0x30] sm:$0xff]
      %v362 = vld [vmem:[%s2 + $0x38] sm:$0xff]
      %v363 = vld [vmem:[%s3] sm:$0xff]
      %v364 = vld [vmem:[%s3 + $0x8] sm:$0xff]
      %v365 = vld [vmem:[%s3 + $0x10] sm:$0xff]
      %v366 = vld [vmem:[%s3 + $0x18] sm:$0xff]
      %v367 = vld [vmem:[%s3 + $0x20] sm:$0xff]
      %v368 = vld [vmem:[%s3 + $0x28] sm:$0xff]
      %v369 = vld [vmem:[%s3 + $0x30] sm:$0xff]
      %v370 = vld [vmem:[%s3 + $0x38] sm:$0xff]
      %v371 = vld [vmem:[%s4] sm:$0xff]
      %v372 = vld [vmem:[%s4 + $0x8] sm:$0xff]
      %374 = vrot.lane.b32.xlu0 %v347, 96
      %v375 = vpop.permute.xlu0 %374
      %vm376 = vcmask 64512
      %v377 = vsel %vm376, %v347, 0
      %v379 = vsel %vm376, %v375, 0
      %381 = vmatprep.subr.mxu0 0.0
      %382 = vmatpush1.xpose.msra.mxu0 %v379
      %383 = vmatprep.subr.mxu0 0.0
      %384 = vmatpush1.xpose.msra.mxu0 0.0
      %385 = vmatprep.subr.mxu0 0.0
      %386 = vmatpush1.xpose.msra.mxu0 0.0
      %387 = vmatprep.subr.mxu0 0.0
      %388 = vmatpush1.xpose.msra.mxu0 0.0
      %389 = vmatprep.subr.mxu0 0.0
      %390 = vmatpush1.xpose.msra.mxu0 0.0
      %391 = vmatprep.subr.mxu0 0.0
      %392 = vmatpush1.xpose.msra.mxu0 0.0
      %393 = vmatprep.subr.mxu0 0.0
      %394 = vmatpush1.xpose.msra.mxu0 0.0
      %395 = vmatprep.subr.mxu0 0.0
      %396 = vmatpush1.xpose.msra.mxu0 0.0
      %397 = vmatprep.subr.mxu0 0.0
      %398 = vmatpush1.xpose.msra.mxu0 0.0
      %399 = vmatprep.subr.mxu0 0.0
      %400 = vmatpush1.xpose.msra.mxu0 0.0
      %401 = vmatprep.subr.mxu0 0.0
      %402 = vmatpush1.xpose.msra.mxu0 0.0
      %403 = vmatprep.subr.mxu0 0.0
      %404 = vmatpush1.xpose.msra.mxu0 0.0
      %405 = vmatprep.subr.mxu0 0.0
      %406 = vmatpush1.xpose.msra.mxu0 0.0
      %407 = vmatprep.subr.mxu0 0.0
      %408 = vmatpush1.xpose.msra.mxu0 0.0
      %409 = vmatprep.subr.mxu0 0.0
      %410 = vmatpush1.xpose.msra.mxu0 0.0
      %411 = vmatprep.subr.mxu0 0.0
      %412 = vmatpush1.xpose.msra.mxu0 0.0
      %413 = vmatprep.subr.mxu0 0.0
      %414 = vmatpush1.xpose.msra.mxu0 0.0
      %415 = vmatprep.subr.mxu0 0.0
      %416 = vmatpush1.xpose.msra.mxu0 0.0
      %417 = vmatprep.subr.mxu0 0.0
      %418 = vmatpush1.xpose.msra.mxu0 0.0
      %419 = vmatprep.subr.mxu0 0.0
      %420 = vmatpush1.xpose.msra.mxu0 0.0
      %421 = vmatprep.subr.mxu0 0.0
      %422 = vmatpush1.xpose.msra.mxu0 0.0
      %423 = vmatprep.subr.mxu0 0.0
      %424 = vmatpush1.xpose.msra.mxu0 0.0
      %425 = vmatprep.subr.mxu0 0.0
      %426 = vmatpush1.xpose.msra.mxu0 0.0
      %427 = vmatprep.subr.mxu0 0.0
      %428 = vmatpush1.xpose.msra.mxu0 0.0
      %429 = vmatprep.subr.mxu0 0.0
      %430 = vmatpush1.xpose.msra.mxu0 0.0
      %431 = vmatprep.subr.mxu0 0.0
      %432 = vmatpush1.xpose.msra.mxu0 0.0
      %433 = vmatprep.subr.mxu0 0.0
      %434 = vmatpush1.xpose.msra.mxu0 0.0
      %435 = vmatprep.subr.mxu0 0.0
      %436 = vmatpush1.xpose.msra.mxu0 0.0
      %437 = vmatprep.subr.mxu0 0.0
      %438 = vmatpush1.xpose.msra.mxu0 0.0
      %439 = vmatprep.subr.mxu0 0.0
      %440 = vmatpush1.xpose.msra.mxu0 0.0
      %441 = vmatprep.subr.mxu0 0.0
      %442 = vmatpush1.xpose.msra.mxu0 0.0
      %443 = vmatprep.subr.mxu0 0.0
      %444 = vmatpush1.xpose.msra.mxu0 0.0
      %445 = vmatprep.mubr.f32.mxu0 0.0
      %446 = vmatmul.mubr.f32.gmra.mrb[0].mxu0 %v377
      %v447 = vpop.f32.mrb[0].mxu0
      %v448 = vadd.f32 0.0, %v447
      %v449 = vpop.f32.mrb[0].mxu0
      %450 = vdwg.mxu0
      %v451 = vsel %vm376, %v448, -inf
      %452 = vmax.xlane.f32.xlu0 %v451
      %v453 = vpop.xlane.xlu0 %452
      %v454 = vsub.f32 %v448, %v453
      %v455 = vmul.f32 %v454, 1.442695
      %v456 = vpow.pop %v455
      %v457 = vsel %vm376, %v456, 0.0
      %458 = vadd.xlane.f32.xlu0 %v457
      %v459 = vpop.xlane.xlu0 %458
      %v460 = vrcp.pop %v459
      %v461 = vmul.f32 %v456, %v460
      %463 = vrot.lane.b32.xlu0 %v352, 96
      %v464 = vpop.permute.xlu0 %463
      %v465 = vsel %vm376, %v352, 0
      %v467 = vsel %vm376, %v464, 0
      %469 = vmatprep.subr.mxu0 0.0
      %470 = vmatpush1.xpose.msra.mxu0 %v467
      %471 = vmatprep.subr.mxu0 0.0
      %472 = vmatpush1.xpose.msra.mxu0 0.0
      %473 = vmatprep.subr.mxu0 0.0
      %474 = vmatpush1.xpose.msra.mxu0 0.0
      %475 = vmatprep.subr.mxu0 0.0
      %476 = vmatpush1.xpose.msra.mxu0 0.0
      %477 = vmatprep.subr.mxu0 0.0
      %478 = vmatpush1.xpose.msra.mxu0 0.0
      %479 = vmatprep.subr.mxu0 0.0
      %480 = vmatpush1.xpose.msra.mxu0 0.0
      %481 = vmatprep.subr.mxu0 0.0
      %482 = vmatpush1.xpose.msra.mxu0 0.0
      %483 = vmatprep.subr.mxu0 0.0
      %484 = vmatpush1.xpose.msra.mxu0 0.0
      %485 = vmatprep.subr.mxu0 0.0
      %486 = vmatpush1.xpose.msra.mxu0 0.0
      %487 = vmatprep.subr.mxu0 0.0
      %488 = vmatpush1.xpose.msra.mxu0 0.0
      %489 = vmatprep.subr.mxu0 0.0
      %490 = vmatpush1.xpose.msra.mxu0 0.0
      %491 = vmatprep.subr.mxu0 0.0
      %492 = vmatpush1.xpose.msra.mxu0 0.0
      %493 = vmatprep.subr.mxu0 0.0
      %494 = vmatpush1.xpose.msra.mxu0 0.0
      %495 = vmatprep.subr.mxu0 0.0
      %496 = vmatpush1.xpose.msra.mxu0 0.0
      %497 = vmatprep.subr.mxu0 0.0
      %498 = vmatpush1.xpose.msra.mxu0 0.0
      %499 = vmatprep.subr.mxu0 0.0
      %500 = vmatpush1.xpose.msra.mxu0 0.0
      %501 = vmatprep.subr.mxu0 0.0
      %502 = vmatpush1.xpose.msra.mxu0 0.0
      %503 = vmatprep.subr.mxu0 0.0
      %504 = vmatpush1.xpose.msra.mxu0 0.0
      %505 = vmatprep.subr.mxu0 0.0
      %506 = vmatpush1.xpose.msra.mxu0 0.0
      %507 = vmatprep.subr.mxu0 0.0
      %508 = vmatpush1.xpose.msra.mxu0 0.0
      %509 = vmatprep.subr.mxu0 0.0
      %510 = vmatpush1.xpose.msra.mxu0 0.0
      %511 = vmatprep.subr.mxu0 0.0
      %512 = vmatpush1.xpose.msra.mxu0 0.0
      %513 = vmatprep.subr.mxu0 0.0
      %514 = vmatpush1.xpose.msra.mxu0 0.0
      %515 = vmatprep.subr.mxu0 0.0
      %516 = vmatpush1.xpose.msra.mxu0 0.0
      %517 = vmatprep.subr.mxu0 0.0
      %518 = vmatpush1.xpose.msra.mxu0 0.0
      %519 = vmatprep.subr.mxu0 0.0
      %520 = vmatpush1.xpose.msra.mxu0 0.0
      %521 = vmatprep.subr.mxu0 0.0
      %522 = vmatpush1.xpose.msra.mxu0 0.0
      %523 = vmatprep.subr.mxu0 0.0
      %524 = vmatpush1.xpose.msra.mxu0 0.0
      %525 = vmatprep.subr.mxu0 0.0
      %526 = vmatpush1.xpose.msra.mxu0 0.0
      %527 = vmatprep.subr.mxu0 0.0
      %528 = vmatpush1.xpose.msra.mxu0 0.0
      %529 = vmatprep.subr.mxu0 0.0
      %530 = vmatpush1.xpose.msra.mxu0 0.0
      %531 = vmatprep.subr.mxu0 0.0
      %532 = vmatpush1.xpose.msra.mxu0 0.0
      %533 = vmatprep.mubr.f32.mxu0 0.0
      %534 = vmatmul.mubr.f32.gmra.mrb[0].mxu0 %v465
      %v535 = vpop.f32.mrb[0].mxu0
      %v536 = vadd.f32 0.0, %v535
      %v537 = vpop.f32.mrb[0].mxu0
      %538 = vdwg.mxu0
      %v539 = vsel %vm376, %v536, -inf
      %540 = vmax.xlane.f32.xlu0 %v539
      %v541 = vpop.xlane.xlu0 %540
      %v542 = vsub.f32 %v536, %v541
      %v543 = vmul.f32 %v542, 1.442695
      %v544 = vpow.pop %v543
      %v545 = vsel %vm376, %v544, 0.0
      %546 = vadd.xlane.f32.xlu0 %v545
      %v547 = vpop.xlane.xlu0 %546
      %v548 = vrcp.pop %v547
      %v549 = vmul.f32 %v544, %v548
      %v551 = vsel %vm376, %v355, 0
      %v554 = vsel %vm376, %v356, 0
      %v557 = vsel %vm376, %v357, 0
      %v560 = vsel %vm376, %v358, 0
      %v563 = vsel %vm376, %v359, 0
      %v566 = vsel %vm376, %v360, 0
      %v569 = vsel %vm376, %v361, 0
      %v572 = vsel %vm376, %v362, 0
      %574 = vmatprep.subr.mxu0 0.0
      %575 = vmatpush1.msra.mxu0 %v461
      %576 = vmatprep.subr.mxu0 0.0
      %577 = vmatpush1.msra.mxu0 0.0
      %578 = vmatprep.subr.mxu0 0.0
      %579 = vmatpush1.msra.mxu0 0.0
      %580 = vmatprep.subr.mxu0 0.0
      %581 = vmatpush1.msra.mxu0 0.0
      %582 = vmatprep.subr.mxu0 0.0
      %583 = vmatpush1.msra.mxu0 0.0
      %584 = vmatprep.subr.mxu0 0.0
      %585 = vmatpush1.msra.mxu0 0.0
      %586 = vmatprep.subr.mxu0 0.0
      %587 = vmatpush1.msra.mxu0 0.0
      %588 = vmatprep.subr.mxu0 0.0
      %589 = vmatpush1.msra.mxu0 0.0
      %590 = vmatprep.subr.mxu0 0.0
      %591 = vmatpush1.msra.mxu0 0.0
      %592 = vmatprep.subr.mxu0 0.0
      %593 = vmatpush1.msra.mxu0 0.0
      %594 = vmatprep.subr.mxu0 0.0
      %595 = vmatpush1.msra.mxu0 0.0
      %596 = vmatprep.subr.mxu0 0.0
      %597 = vmatpush1.msra.mxu0 0.0
      %598 = vmatprep.subr.mxu0 0.0
      %599 = vmatpush1.msra.mxu0 0.0
      %600 = vmatprep.subr.mxu0 0.0
      %601 = vmatpush1.msra.mxu0 0.0
      %602 = vmatprep.subr.mxu0 0.0
      %603 = vmatpush1.msra.mxu0 0.0
      %604 = vmatprep.subr.mxu0 0.0
      %605 = vmatpush1.msra.mxu0 0.0
      %606 = vmatprep.subr.mxu0 0.0
      %607 = vmatpush1.msra.mxu0 0.0
      %608 = vmatprep.subr.mxu0 0.0
      %609 = vmatpush1.msra.mxu0 0.0
      %610 = vmatprep.subr.mxu0 0.0
      %611 = vmatpush1.msra.mxu0 0.0
      %612 = vmatprep.subr.mxu0 0.0
      %613 = vmatpush1.msra.mxu0 0.0
      %614 = vmatprep.subr.mxu0 0.0
      %615 = vmatpush1.msra.mxu0 0.0
      %616 = vmatprep.subr.mxu0 0.0
      %617 = vmatpush1.msra.mxu0 0.0
      %618 = vmatprep.subr.mxu0 0.0
      %619 = vmatpush1.msra.mxu0 0.0
      %620 = vmatprep.subr.mxu0 0.0
      %621 = vmatpush1.msra.mxu0 0.0
      %622 = vmatprep.subr.mxu0 0.0
      %623 = vmatpush1.msra.mxu0 0.0
      %624 = vmatprep.subr.mxu0 0.0
      %625 = vmatpush1.msra.mxu0 0.0
      %626 = vmatprep.subr.mxu0 0.0
      %627 = vmatpush1.msra.mxu0 0.0
      %628 = vmatprep.subr.mxu0 0.0
      %629 = vmatpush1.msra.mxu0 0.0
      %630 = vmatprep.subr.mxu0 0.0
      %631 = vmatpush1.msra.mxu0 0.0
      %632 = vmatprep.subr.mxu0 0.0
      %633 = vmatpush1.msra.mxu0 0.0
      %634 = vmatprep.subr.mxu0 0.0
      %635 = vmatpush1.msra.mxu0 0.0
      %636 = vmatprep.subr.mxu0 0.0
      %637 = vmatpush1.msra.mxu0 0.0
      %638 = vmatprep.mubr.f32.mxu0 0.0
      %639 = vmatmul.mubr.f32.gmra.mrb[0].mxu0 %v551
      %v640 = vpop.f32.mrb[0].mxu0
      %v641 = vadd.f32 0.0, %v640
      %v642 = vpop.f32.mrb[0].mxu0
      %643 = vmatprep.mubr.f32.mxu0 0.0
      %644 = vmatmul.mubr.f32.gmra.mrb[0].mxu0 %v554
      %v645 = vpop.f32.mrb[0].mxu0
      %v646 = vadd.f32 0.0, %v645
      %v647 = vpop.f32.mrb[0].mxu0
      %648 = vmatprep.mubr.f32.mxu0 0.0
      %649 = vmatmul.mubr.f32.gmra.mrb[0].mxu0 %v557
      %v650 = vpop.f32.mrb[0].mxu0
      %v651 = vadd.f32 0.0, %v650
      %v652 = vpop.f32.mrb[0].mxu0
      %653 = vmatprep.mubr.f32.mxu0 0.0
      %654 = vmatmul.mubr.f32.gmra.mrb[0].mxu0 %v560
      %v655 = vpop.f32.mrb[0].mxu0
      %v656 = vadd.f32 0.0, %v655
      %v657 = vpop.f32.mrb[0].mxu0
      %658 = vmatprep.mubr.f32.mxu0 0.0
      %659 = vmatmul.mubr.f32.gmra.mrb[0].mxu0 %v563
      %v660 = vpop.f32.mrb[0].mxu0
      %v661 = vadd.f32 0.0, %v660
      %v662 = vpop.f32.mrb[0].mxu0
      %663 = vmatprep.mubr.f32.mxu0 0.0
      %664 = vmatmul.mubr.f32.gmra.mrb[0].mxu0 %v566
      %v665 = vpop.f32.mrb[0].mxu0
      %v666 = vadd.f32 0.0, %v665
      %v667 = vpop.f32.mrb[0].mxu0
      %668 = vmatprep.mubr.f32.mxu0 0.0
      %669 = vmatmul.mubr.f32.gmra.mrb[0].mxu0 %v569
      %v670 = vpop.f32.mrb[0].mxu0
      %v671 = vadd.f32 0.0, %v670
      %v672 = vpop.f32.mrb[0].mxu0
      %673 = vmatprep.mubr.f32.mxu0 0.0
      %674 = vmatmul.mubr.f32.gmra.mrb[0].mxu0 %v572
      %v675 = vpop.f32.mrb[0].mxu0
      %v676 = vadd.f32 0.0, %v675
      %v677 = vpop.f32.mrb[0].mxu0
      %678 = vdwg.mxu0
      %v680 = vsel %vm376, %v363, 0
      %v683 = vsel %vm376, %v364, 0
      %v686 = vsel %vm376, %v365, 0
      %v689 = vsel %vm376, %v366, 0
      %v692 = vsel %vm376, %v367, 0
      %v695 = vsel %vm376, %v368, 0
      %v698 = vsel %vm376, %v369, 0
      %v701 = vsel %vm376, %v370, 0
      %703 = vmatprep.subr.mxu0 0.0
      %704 = vmatpush1.msra.mxu0 %v549
      %705 = vmatprep.subr.mxu0 0.0
      %706 = vmatpush1.msra.mxu0 0.0
      %707 = vmatprep.subr.mxu0 0.0
      %708 = vmatpush1.msra.mxu0 0.0
      %709 = vmatprep.subr.mxu0 0.0
      %710 = vmatpush1.msra.mxu0 0.0
      %711 = vmatprep.subr.mxu0 0.0
      %712 = vmatpush1.msra.mxu0 0.0
      %713 = vmatprep.subr.mxu0 0.0
      %714 = vmatpush1.msra.mxu0 0.0
      %715 = vmatprep.subr.mxu0 0.0
      %716 = vmatpush1.msra.mxu0 0.0
      %717 = vmatprep.subr.mxu0 0.0
      %718 = vmatpush1.msra.mxu0 0.0
      %719 = vmatprep.subr.mxu0 0.0
      %720 = vmatpush1.msra.mxu0 0.0
      %721 = vmatprep.subr.mxu0 0.0
      %722 = vmatpush1.msra.mxu0 0.0
      %723 = vmatprep.subr.mxu0 0.0
      %724 = vmatpush1.msra.mxu0 0.0
      %725 = vmatprep.subr.mxu0 0.0
      %726 = vmatpush1.msra.mxu0 0.0
      %727 = vmatprep.subr.mxu0 0.0
      %728 = vmatpush1.msra.mxu0 0.0
      %729 = vmatprep.subr.mxu0 0.0
      %730 = vmatpush1.msra.mxu0 0.0
      %731 = vmatprep.subr.mxu0 0.0
      %732 = vmatpush1.msra.mxu0 0.0
      %733 = vmatprep.subr.mxu0 0.0
      %734 = vmatpush1.msra.mxu0 0.0
      %735 = vmatprep.subr.mxu0 0.0
      %736 = vmatpush1.msra.mxu0 0.0
      %737 = vmatprep.subr.mxu0 0.0
      %738 = vmatpush1.msra.mxu0 0.0
      %739 = vmatprep.subr.mxu0 0.0
      %740 = vmatpush1.msra.mxu0 0.0
      %741 = vmatprep.subr.mxu0 0.0
      %742 = vmatpush1.msra.mxu0 0.0
      %743 = vmatprep.subr.mxu0 0.0
      %744 = vmatpush1.msra.mxu0 0.0
      %745 = vmatprep.subr.mxu0 0.0
      %746 = vmatpush1.msra.mxu0 0.0
      %747 = vmatprep.subr.mxu0 0.0
      %748 = vmatpush1.msra.mxu0 0.0
      %749 = vmatprep.subr.mxu0 0.0
      %750 = vmatpush1.msra.mxu0 0.0
      %751 = vmatprep.subr.mxu0 0.0
      %752 = vmatpush1.msra.mxu0 0.0
      %753 = vmatprep.subr.mxu0 0.0
      %754 = vmatpush1.msra.mxu0 0.0
      %755 = vmatprep.subr.mxu0 0.0
      %756 = vmatpush1.msra.mxu0 0.0
      %757 = vmatprep.subr.mxu0 0.0
      %758 = vmatpush1.msra.mxu0 0.0
      %759 = vmatprep.subr.mxu0 0.0
      %760 = vmatpush1.msra.mxu0 0.0
      %761 = vmatprep.subr.mxu0 0.0
      %762 = vmatpush1.msra.mxu0 0.0
      %763 = vmatprep.subr.mxu0 0.0
      %764 = vmatpush1.msra.mxu0 0.0
      %765 = vmatprep.subr.mxu0 0.0
      %766 = vmatpush1.msra.mxu0 0.0
      %767 = vmatprep.mubr.f32.mxu0 0.0
      %768 = vmatmul.mubr.f32.gmra.mrb[0].mxu0 %v680
      %v769 = vpop.f32.mrb[0].mxu0
      %v770 = vadd.f32 0.0, %v769
      %v771 = vpop.f32.mrb[0].mxu0
      %772 = vmatprep.mubr.f32.mxu0 0.0
      %773 = vmatmul.mubr.f32.gmra.mrb[0].mxu0 %v683
      %v774 = vpop.f32.mrb[0].mxu0
      %v775 = vadd.f32 0.0, %v774
      %v776 = vpop.f32.mrb[0].mxu0
      %777 = vmatprep.mubr.f32.mxu0 0.0
      %778 = vmatmul.mubr.f32.gmra.mrb[0].mxu0 %v686
      %v779 = vpop.f32.mrb[0].mxu0
      %v780 = vadd.f32 0.0, %v779
      %v781 = vpop.f32.mrb[0].mxu0
      %782 = vmatprep.mubr.f32.mxu0 0.0
      %783 = vmatmul.mubr.f32.gmra.mrb[0].mxu0 %v689
      %v784 = vpop.f32.mrb[0].mxu0
      %v785 = vadd.f32 0.0, %v784
      %v786 = vpop.f32.mrb[0].mxu0
      %787 = vmatprep.mubr.f32.mxu0 0.0
      %788 = vmatmul.mubr.f32.gmra.mrb[0].mxu0 %v692
      %v789 = vpop.f32.mrb[0].mxu0
      %v790 = vadd.f32 0.0, %v789
      %v791 = vpop.f32.mrb[0].mxu0
      %792 = vmatprep.mubr.f32.mxu0 0.0
      %793 = vmatmul.mubr.f32.gmra.mrb[0].mxu0 %v695
      %v794 = vpop.f32.mrb[0].mxu0
      %v795 = vadd.f32 0.0, %v794
      %v796 = vpop.f32.mrb[0].mxu0
      %797 = vmatprep.mubr.f32.mxu0 0.0
      %798 = vmatmul.mubr.f32.gmra.mrb[0].mxu0 %v698
      %v799 = vpop.f32.mrb[0].mxu0
      %v800 = vadd.f32 0.0, %v799
      %v801 = vpop.f32.mrb[0].mxu0
      %802 = vmatprep.mubr.f32.mxu0 0.0
      %803 = vmatmul.mubr.f32.gmra.mrb[0].mxu0 %v701
      %v804 = vpop.f32.mrb[0].mxu0
      %v805 = vadd.f32 0.0, %v804
      %v806 = vpop.f32.mrb[0].mxu0
      %807 = vdwg.mxu0
      %816 = vrot.lane.b32.xlu0 %v770, 8
      %v817 = vpop.permute.xlu0 %816
      %818 = vrot.lane.b32.xlu0 %v775, 8
      %v819 = vpop.permute.xlu0 %818
      %820 = vrot.lane.b32.xlu0 %v780, 8
      %v821 = vpop.permute.xlu0 %820
      %822 = vrot.lane.b32.xlu0 %v785, 8
      %v823 = vpop.permute.xlu0 %822
      %824 = vrot.lane.b32.xlu0 %v790, 8
      %v825 = vpop.permute.xlu0 %824
      %826 = vrot.lane.b32.xlu0 %v795, 8
      %v827 = vpop.permute.xlu0 %826
      %828 = vrot.lane.b32.xlu0 %v800, 8
      %v829 = vpop.permute.xlu0 %828
      %830 = vrot.lane.b32.xlu0 %v805, 8
      %v831 = vpop.permute.xlu0 %830
      %v840 = vsel %vm376, %v641, %v817
      %v841 = vsel %vm376, %v646, %v819
      %v842 = vsel %vm376, %v651, %v821
      %v843 = vsel %vm376, %v656, %v823
      %v844 = vsel %vm376, %v661, %v825
      %v845 = vsel %vm376, %v666, %v827
      %v846 = vsel %vm376, %v671, %v829
      %v847 = vsel %vm376, %v676, %v831
      %vm848 = vcmask 130048
      %v850 = vsel %vm848, %v840, 0
      %v853 = vsel %vm848, %v841, 0
      %v856 = vsel %vm848, %v842, 0
      %v859 = vsel %vm848, %v843, 0
      %v862 = vsel %vm848, %v844, 0
      %v865 = vsel %vm848, %v845, 0
      %v868 = vsel %vm848, %v846, 0
      %v871 = vsel %vm848, %v847, 0
      %873 = vmatprep.subr.mxu0 0.0
      %874 = vmatpush1.msra.mxu0 %v371
      %875 = vmatprep.subr.mxu0 0.0
      %876 = vmatpush1.msra.mxu0 %v372
      %877 = vmatprep.subr.mxu0 0.0
      %878 = vmatpush1.msra.mxu0 0.0
      %879 = vmatprep.subr.mxu0 0.0
      %880 = vmatpush1.msra.mxu0 0.0
      %881 = vmatprep.subr.mxu0 0.0
      %882 = vmatpush1.msra.mxu0 0.0
      %883 = vmatprep.subr.mxu0 0.0
      %884 = vmatpush1.msra.mxu0 0.0
      %885 = vmatprep.subr.mxu0 0.0
      %886 = vmatpush1.msra.mxu0 0.0
      %887 = vmatprep.subr.mxu0 0.0
      %888 = vmatpush1.msra.mxu0 0.0
      %889 = vmatprep.subr.mxu0 0.0
      %890 = vmatpush1.msra.mxu0 0.0
      %891 = vmatprep.subr.mxu0 0.0
      %892 = vmatpush1.msra.mxu0 0.0
      %893 = vmatprep.subr.mxu0 0.0
      %894 = vmatpush1.msra.mxu0 0.0
      %895 = vmatprep.subr.mxu0 0.0
      %896 = vmatpush1.msra.mxu0 0.0
      %897 = vmatprep.subr.mxu0 0.0
      %898 = vmatpush1.msra.mxu0 0.0
      %899 = vmatprep.subr.mxu0 0.0
      %900 = vmatpush1.msra.mxu0 0.0
      %901 = vmatprep.subr.mxu0 0.0
      %902 = vmatpush1.msra.mxu0 0.0
      %903 = vmatprep.subr.mxu0 0.0
      %904 = vmatpush1.msra.mxu0 0.0
      %905 = vmatprep.subr.mxu0 0.0
      %906 = vmatpush1.msra.mxu0 0.0
      %907 = vmatprep.subr.mxu0 0.0
      %908 = vmatpush1.msra.mxu0 0.0
      %909 = vmatprep.subr.mxu0 0.0
      %910 = vmatpush1.msra.mxu0 0.0
      %911 = vmatprep.subr.mxu0 0.0
      %912 = vmatpush1.msra.mxu0 0.0
      %913 = vmatprep.subr.mxu0 0.0
      %914 = vmatpush1.msra.mxu0 0.0
      %915 = vmatprep.subr.mxu0 0.0
      %916 = vmatpush1.msra.mxu0 0.0
      %917 = vmatprep.subr.mxu0 0.0
      %918 = vmatpush1.msra.mxu0 0.0
      %919 = vmatprep.subr.mxu0 0.0
      %920 = vmatpush1.msra.mxu0 0.0
      %921 = vmatprep.subr.mxu0 0.0
      %922 = vmatpush1.msra.mxu0 0.0
      %923 = vmatprep.subr.mxu0 0.0
      %924 = vmatpush1.msra.mxu0 0.0
      %925 = vmatprep.subr.mxu0 0.0
      %926 = vmatpush1.msra.mxu0 0.0
      %927 = vmatprep.subr.mxu0 0.0
      %928 = vmatpush1.msra.mxu0 0.0
      %929 = vmatprep.subr.mxu0 0.0
      %930 = vmatpush1.msra.mxu0 0.0
      %931 = vmatprep.subr.mxu0 0.0
      %932 = vmatpush1.msra.mxu0 0.0
      %933 = vmatprep.subr.mxu0 0.0
      %934 = vmatpush1.msra.mxu0 0.0
      %935 = vmatprep.subr.mxu0 0.0
      %936 = vmatpush1.msra.mxu0 0.0
      %937 = vmatprep.mubr.f32.mxu0 0.0
      %938 = vmatmul.mubr.f32.gmra.mrb[0].mxu0 %v850
      %v939 = vpop.f32.mrb[0].mxu0
      %v940 = vadd.f32 0.0, %v939
      %v941 = vpop.f32.mrb[0].mxu0
      %942 = vmatprep.mubr.f32.mxu0 0.0
      %943 = vmatmul.mubr.f32.gmra.mrb[0].mxu0 %v853
      %v944 = vpop.f32.mrb[0].mxu0
      %v945 = vadd.f32 0.0, %v944
      %v946 = vpop.f32.mrb[0].mxu0
      %947 = vmatprep.mubr.f32.mxu0 0.0
      %948 = vmatmul.mubr.f32.gmra.mrb[0].mxu0 %v856
      %v949 = vpop.f32.mrb[0].mxu0
      %v950 = vadd.f32 0.0, %v949
      %v951 = vpop.f32.mrb[0].mxu0
      %952 = vmatprep.mubr.f32.mxu0 0.0
      %953 = vmatmul.mubr.f32.gmra.mrb[0].mxu0 %v859
      %v954 = vpop.f32.mrb[0].mxu0
      %v955 = vadd.f32 0.0, %v954
      %v956 = vpop.f32.mrb[0].mxu0
      %957 = vmatprep.mubr.f32.mxu0 0.0
      %958 = vmatmul.mubr.f32.gmra.mrb[0].mxu0 %v862
      %v959 = vpop.f32.mrb[0].mxu0
      %v960 = vadd.f32 0.0, %v959
      %v961 = vpop.f32.mrb[0].mxu0
      %962 = vmatprep.mubr.f32.mxu0 0.0
      %963 = vmatmul.mubr.f32.gmra.mrb[0].mxu0 %v865
      %v964 = vpop.f32.mrb[0].mxu0
      %v965 = vadd.f32 0.0, %v964
      %v966 = vpop.f32.mrb[0].mxu0
      %967 = vmatprep.mubr.f32.mxu0 0.0
      %968 = vmatmul.mubr.f32.gmra.mrb[0].mxu0 %v868
      %v969 = vpop.f32.mrb[0].mxu0
      %v970 = vadd.f32 0.0, %v969
      %v971 = vpop.f32.mrb[0].mxu0
      %972 = vmatprep.mubr.f32.mxu0 0.0
      %973 = vmatmul.mubr.f32.gmra.mrb[0].mxu0 %v871
      %v974 = vpop.f32.mrb[0].mxu0
      %v975 = vadd.f32 0.0, %v974
      %v976 = vpop.f32.mrb[0].mxu0
      %977 = vdwg.mxu0
      %978 = vst [vmem:[%s266] sm:$0xff] %v940
      %979 = vst [vmem:[%s266 + $0x8] sm:$0xff] %v945
      %980 = vst [vmem:[%s266 + $0x10] sm:$0xff] %v950
      %981 = vst [vmem:[%s266 + $0x18] sm:$0xff] %v955
      %982 = vst [vmem:[%s266 + $0x20] sm:$0xff] %v960
      %983 = vst [vmem:[%s266 + $0x28] sm:$0xff] %v965
      %984 = vst [vmem:[%s266 + $0x30] sm:$0xff] %v970
      %985 = vst [vmem:[%s266 + $0x38] sm:$0xff] %v975
      %986 = vrot.lane.b32.xlu0 %v347, 120
      %v987 = vpop.permute.xlu0 %986
      %988 = vrot.lane.b32.xlu0 %v347, 88
      %v989 = vpop.permute.xlu0 %988
      %v990 = vsel %vm376, %v987, 0
      %v992 = vsel %vm376, %v989, 0
      %994 = vmatprep.subr.mxu0 0.0
      %995 = vmatpush1.xpose.msra.mxu0 %v992
      %996 = vmatprep.subr.mxu0 0.0
      %997 = vmatpush1.xpose.msra.mxu0 0.0
      %998 = vmatprep.subr.mxu0 0.0
      %999 = vmatpush1.xpose.msra.mxu0 0.0
      %1000 = vmatprep.subr.mxu0 0.0
      %1001 = vmatpush1.xpose.msra.mxu0 0.0
      %1002 = vmatprep.subr.mxu0 0.0
      %1003 = vmatpush1.xpose.msra.mxu0 0.0
      %1004 = vmatprep.subr.mxu0 0.0
      %1005 = vmatpush1.xpose.msra.mxu0 0.0
      %1006 = vmatprep.subr.mxu0 0.0
      %1007 = vmatpush1.xpose.msra.mxu0 0.0
      %1008 = vmatprep.subr.mxu0 0.0
      %1009 = vmatpush1.xpose.msra.mxu0 0.0
      %1010 = vmatprep.subr.mxu0 0.0
      %1011 = vmatpush1.xpose.msra.mxu0 0.0
      %1012 = vmatprep.subr.mxu0 0.0
      %1013 = vmatpush1.xpose.msra.mxu0 0.0
      %1014 = vmatprep.subr.mxu0 0.0
      %1015 = vmatpush1.xpose.msra.mxu0 0.0
      %1016 = vmatprep.subr.mxu0 0.0
      %1017 = vmatpush1.xpose.msra.mxu0 0.0
      %1018 = vmatprep.subr.mxu0 0.0
      %1019 = vmatpush1.xpose.msra.mxu0 0.0
      %1020 = vmatprep.subr.mxu0 0.0
      %1021 = vmatpush1.xpose.msra.mxu0 0.0
      %1022 = vmatprep.subr.mxu0 0.0
      %1023 = vmatpush1.xpose.msra.mxu0 0.0
      %1024 = vmatprep.subr.mxu0 0.0
      %1025 = vmatpush1.xpose.msra.mxu0 0.0
      %1026 = vmatprep.subr.mxu0 0.0
      %1027 = vmatpush1.xpose.msra.mxu0 0.0
      %1028 = vmatprep.subr.mxu0 0.0
      %1029 = vmatpush1.xpose.msra.mxu0 0.0
      %1030 = vmatprep.subr.mxu0 0.0
      %1031 = vmatpush1.xpose.msra.mxu0 0.0
      %1032 = vmatprep.subr.mxu0 0.0
      %1033 = vmatpush1.xpose.msra.mxu0 0.0
      %1034 = vmatprep.subr.mxu0 0.0
      %1035 = vmatpush1.xpose.msra.mxu0 0.0
      %1036 = vmatprep.subr.mxu0 0.0
      %1037 = vmatpush1.xpose.msra.mxu0 0.0
      %1038 = vmatprep.subr.mxu0 0.0
      %1039 = vmatpush1.xpose.msra.mxu0 0.0
      %1040 = vmatprep.subr.mxu0 0.0
      %1041 = vmatpush1.xpose.msra.mxu0 0.0
      %1042 = vmatprep.subr.mxu0 0.0
      %1043 = vmatpush1.xpose.msra.mxu0 0.0
      %1044 = vmatprep.subr.mxu0 0.0
      %1045 = vmatpush1.xpose.msra.mxu0 0.0
      %1046 = vmatprep.subr.mxu0 0.0
      %1047 = vmatpush1.xpose.msra.mxu0 0.0
      %1048 = vmatprep.subr.mxu0 0.0
      %1049 = vmatpush1.xpose.msra.mxu0 0.0
      %1050 = vmatprep.subr.mxu0 0.0
      %1051 = vmatpush1.xpose.msra.mxu0 0.0
      %1052 = vmatprep.subr.mxu0 0.0
      %1053 = vmatpush1.xpose.msra.mxu0 0.0
      %1054 = vmatprep.subr.mxu0 0.0
      %1055 = vmatpush1.xpose.msra.mxu0 0.0
      %1056 = vmatprep.subr.mxu0 0.0
      %1057 = vmatpush1.xpose.msra.mxu0 0.0
      %1058 = vmatprep.mubr.f32.mxu0 0.0
      %1059 = vmatmul.mubr.f32.gmra.mrb[0].mxu0 %v990
      %v1060 = vpop.f32.mrb[0].mxu0
      %v1061 = vadd.f32 0.0, %v1060
      %v1062 = vpop.f32.mrb[0].mxu0
      %1063 = vdwg.mxu0
      %v1064 = vsel %vm376, %v1061, -inf
      %1065 = vmax.xlane.f32.xlu0 %v1064
      %v1066 = vpop.xlane.xlu0 %1065
      %v1067 = vsub.f32 %v1061, %v1066
      %v1068 = vmul.f32 %v1067, 1.442695
      %v1069 = vpow.pop %v1068
      %v1070 = vsel %vm376, %v1069, 0.0
      %1071 = vadd.xlane.f32.xlu0 %v1070
      %v1072 = vpop.xlane.xlu0 %1071
      %v1073 = vrcp.pop %v1072
      %v1074 = vmul.f32 %v1069, %v1073
      %1075 = vrot.lane.b32.xlu0 %v352, 120
      %v1076 = vpop.permute.xlu0 %1075
      %1077 = vrot.lane.b32.xlu0 %v352, 88
      %v1078 = vpop.permute.xlu0 %1077
      %v1079 = vsel %vm376, %v1076, 0
      %v1081 = vsel %vm376, %v1078, 0
      %1083 = vmatprep.subr.mxu0 0.0
      %1084 = vmatpush1.xpose.msra.mxu0 %v1081
      %1085 = vmatprep.subr.mxu0 0.0
      %1086 = vmatpush1.xpose.msra.mxu0 0.0
      %1087 = vmatprep.subr.mxu0 0.0
      %1088 = vmatpush1.xpose.msra.mxu0 0.0
      %1089 = vmatprep.subr.mxu0 0.0
      %1090 = vmatpush1.xpose.msra.mxu0 0.0
      %1091 = vmatprep.subr.mxu0 0.0
      %1092 = vmatpush1.xpose.msra.mxu0 0.0
      %1093 = vmatprep.subr.mxu0 0.0
      %1094 = vmatpush1.xpose.msra.mxu0 0.0
      %1095 = vmatprep.subr.mxu0 0.0
      %1096 = vmatpush1.xpose.msra.mxu0 0.0
      %1097 = vmatprep.subr.mxu0 0.0
      %1098 = vmatpush1.xpose.msra.mxu0 0.0
      %1099 = vmatprep.subr.mxu0 0.0
      %1100 = vmatpush1.xpose.msra.mxu0 0.0
      %1101 = vmatprep.subr.mxu0 0.0
      %1102 = vmatpush1.xpose.msra.mxu0 0.0
      %1103 = vmatprep.subr.mxu0 0.0
      %1104 = vmatpush1.xpose.msra.mxu0 0.0
      %1105 = vmatprep.subr.mxu0 0.0
      %1106 = vmatpush1.xpose.msra.mxu0 0.0
      %1107 = vmatprep.subr.mxu0 0.0
      %1108 = vmatpush1.xpose.msra.mxu0 0.0
      %1109 = vmatprep.subr.mxu0 0.0
      %1110 = vmatpush1.xpose.msra.mxu0 0.0
      %1111 = vmatprep.subr.mxu0 0.0
      %1112 = vmatpush1.xpose.msra.mxu0 0.0
      %1113 = vmatprep.subr.mxu0 0.0
      %1114 = vmatpush1.xpose.msra.mxu0 0.0
      %1115 = vmatprep.subr.mxu0 0.0
      %1116 = vmatpush1.xpose.msra.mxu0 0.0
      %1117 = vmatprep.subr.mxu0 0.0
      %1118 = vmatpush1.xpose.msra.mxu0 0.0
      %1119 = vmatprep.subr.mxu0 0.0
      %1120 = vmatpush1.xpose.msra.mxu0 0.0
      %1121 = vmatprep.subr.mxu0 0.0
      %1122 = vmatpush1.xpose.msra.mxu0 0.0
      %1123 = vmatprep.subr.mxu0 0.0
      %1124 = vmatpush1.xpose.msra.mxu0 0.0
      %1125 = vmatprep.subr.mxu0 0.0
      %1126 = vmatpush1.xpose.msra.mxu0 0.0
      %1127 = vmatprep.subr.mxu0 0.0
      %1128 = vmatpush1.xpose.msra.mxu0 0.0
      %1129 = vmatprep.subr.mxu0 0.0
      %1130 = vmatpush1.xpose.msra.mxu0 0.0
      %1131 = vmatprep.subr.mxu0 0.0
      %1132 = vmatpush1.xpose.msra.mxu0 0.0
      %1133 = vmatprep.subr.mxu0 0.0
      %1134 = vmatpush1.xpose.msra.mxu0 0.0
      %1135 = vmatprep.subr.mxu0 0.0
      %1136 = vmatpush1.xpose.msra.mxu0 0.0
      %1137 = vmatprep.subr.mxu0 0.0
      %1138 = vmatpush1.xpose.msra.mxu0 0.0
      %1139 = vmatprep.subr.mxu0 0.0
      %1140 = vmatpush1.xpose.msra.mxu0 0.0
      %1141 = vmatprep.subr.mxu0 0.0
      %1142 = vmatpush1.xpose.msra.mxu0 0.0
      %1143 = vmatprep.subr.mxu0 0.0
      %1144 = vmatpush1.xpose.msra.mxu0 0.0
      %1145 = vmatprep.subr.mxu0 0.0
      %1146 = vmatpush1.xpose.msra.mxu0 0.0
      %1147 = vmatprep.mubr.f32.mxu0 0.0
      %1148 = vmatmul.mubr.f32.gmra.mrb[0].mxu0 %v1079
      %v1149 = vpop.f32.mrb[0].mxu0
      %v1150 = vadd.f32 0.0, %v1149
      %v1151 = vpop.f32.mrb[0].mxu0
      %1152 = vdwg.mxu0
      %v1153 = vsel %vm376, %v1150, -inf
      %1154 = vmax.xlane.f32.xlu0 %v1153
      %v1155 = vpop.xlane.xlu0 %1154
      %v1156 = vsub.f32 %v1150, %v1155
      %v1157 = vmul.f32 %v1156, 1.442695
      %v1158 = vpow.pop %v1157
      %v1159 = vsel %vm376, %v1158, 0.0
      %1160 = vadd.xlane.f32.xlu0 %v1159
      %v1161 = vpop.xlane.xlu0 %1160
      %v1162 = vrcp.pop %v1161
      %v1163 = vmul.f32 %v1158, %v1162
      %1164 = vmatprep.subr.mxu0 0.0
      %1165 = vmatpush1.msra.mxu0 %v1074
      %1166 = vmatprep.subr.mxu0 0.0
      %1167 = vmatpush1.msra.mxu0 0.0
      %1168 = vmatprep.subr.mxu0 0.0
      %1169 = vmatpush1.msra.mxu0 0.0
      %1170 = vmatprep.subr.mxu0 0.0
      %1171 = vmatpush1.msra.mxu0 0.0
      %1172 = vmatprep.subr.mxu0 0.0
      %1173 = vmatpush1.msra.mxu0 0.0
      %1174 = vmatprep.subr.mxu0 0.0
      %1175 = vmatpush1.msra.mxu0 0.0
      %1176 = vmatprep.subr.mxu0 0.0
      %1177 = vmatpush1.msra.mxu0 0.0
      %1178 = vmatprep.subr.mxu0 0.0
      %1179 = vmatpush1.msra.mxu0 0.0
      %1180 = vmatprep.subr.mxu0 0.0
      %1181 = vmatpush1.msra.mxu0 0.0
      %1182 = vmatprep.subr.mxu0 0.0
      %1183 = vmatpush1.msra.mxu0 0.0
      %1184 = vmatprep.subr.mxu0 0.0
      %1185 = vmatpush1.msra.mxu0 0.0
      %1186 = vmatprep.subr.mxu0 0.0
      %1187 = vmatpush1.msra.mxu0 0.0
      %1188 = vmatprep.subr.mxu0 0.0
      %1189 = vmatpush1.msra.mxu0 0.0
      %1190 = vmatprep.subr.mxu0 0.0
      %1191 = vmatpush1.msra.mxu0 0.0
      %1192 = vmatprep.subr.mxu0 0.0
      %1193 = vmatpush1.msra.mxu0 0.0
      %1194 = vmatprep.subr.mxu0 0.0
      %1195 = vmatpush1.msra.mxu0 0.0
      %1196 = vmatprep.subr.mxu0 0.0
      %1197 = vmatpush1.msra.mxu0 0.0
      %1198 = vmatprep.subr.mxu0 0.0
      %1199 = vmatpush1.msra.mxu0 0.0
      %1200 = vmatprep.subr.mxu0 0.0
      %1201 = vmatpush1.msra.mxu0 0.0
      %1202 = vmatprep.subr.mxu0 0.0
      %1203 = vmatpush1.msra.mxu0 0.0
      %1204 = vmatprep.subr.mxu0 0.0
      %1205 = vmatpush1.msra.mxu0 0.0
      %1206 = vmatprep.subr.mxu0 0.0
      %1207 = vmatpush1.msra.mxu0 0.0
      %1208 = vmatprep.subr.mxu0 0.0
      %1209 = vmatpush1.msra.mxu0 0.0
      %1210 = vmatprep.subr.mxu0 0.0
      %1211 = vmatpush1.msra.mxu0 0.0
      %1212 = vmatprep.subr.mxu0 0.0
      %1213 = vmatpush1.msra.mxu0 0.0
      %1214 = vmatprep.subr.mxu0 0.0
      %1215 = vmatpush1.msra.mxu0 0.0
      %1216 = vmatprep.subr.mxu0 0.0
      %1217 = vmatpush1.msra.mxu0 0.0
      %1218 = vmatprep.subr.mxu0 0.0
      %1219 = vmatpush1.msra.mxu0 0.0
      %1220 = vmatprep.subr.mxu0 0.0
      %1221 = vmatpush1.msra.mxu0 0.0
      %1222 = vmatprep.subr.mxu0 0.0
      %1223 = vmatpush1.msra.mxu0 0.0
      %1224 = vmatprep.subr.mxu0 0.0
      %1225 = vmatpush1.msra.mxu0 0.0
      %1226 = vmatprep.subr.mxu0 0.0
      %1227 = vmatpush1.msra.mxu0 0.0
      %1228 = vmatprep.mubr.f32.mxu0 0.0
      %1229 = vmatmul.mubr.f32.gmra.mrb[0].mxu0 %v551
      %v1230 = vpop.f32.mrb[0].mxu0
      %v1231 = vadd.f32 0.0, %v1230
      %v1232 = vpop.f32.mrb[0].mxu0
      %1233 = vmatprep.mubr.f32.mxu0 0.0
      %1234 = vmatmul.mubr.f32.gmra.mrb[0].mxu0 %v554
      %v1235 = vpop.f32.mrb[0].mxu0
      %v1236 = vadd.f32 0.0, %v1235
      %v1237 = vpop.f32.mrb[0].mxu0
      %1238 = vmatprep.mubr.f32.mxu0 0.0
      %1239 = vmatmul.mubr.f32.gmra.mrb[0].mxu0 %v557
      %v1240 = vpop.f32.mrb[0].mxu0
      %v1241 = vadd.f32 0.0, %v1240
      %v1242 = vpop.f32.mrb[0].mxu0
      %1243 = vmatprep.mubr.f32.mxu0 0.0
      %1244 = vmatmul.mubr.f32.gmra.mrb[0].mxu0 %v560
      %v1245 = vpop.f32.mrb[0].mxu0
      %v1246 = vadd.f32 0.0, %v1245
      %v1247 = vpop.f32.mrb[0].mxu0
      %1248 = vmatprep.mubr.f32.mxu0 0.0
      %1249 = vmatmul.mubr.f32.gmra.mrb[0].mxu0 %v563
      %v1250 = vpop.f32.mrb[0].mxu0
      %v1251 = vadd.f32 0.0, %v1250
      %v1252 = vpop.f32.mrb[0].mxu0
      %1253 = vmatprep.mubr.f32.mxu0 0.0
      %1254 = vmatmul.mubr.f32.gmra.mrb[0].mxu0 %v566
      %v1255 = vpop.f32.mrb[0].mxu0
      %v1256 = vadd.f32 0.0, %v1255
      %v1257 = vpop.f32.mrb[0].mxu0
      %1258 = vmatprep.mubr.f32.mxu0 0.0
      %1259 = vmatmul.mubr.f32.gmra.mrb[0].mxu0 %v569
      %v1260 = vpop.f32.mrb[0].mxu0
      %v1261 = vadd.f32 0.0, %v1260
      %v1262 = vpop.f32.mrb[0].mxu0
      %1263 = vmatprep.mubr.f32.mxu0 0.0
      %1264 = vmatmul.mubr.f32.gmra.mrb[0].mxu0 %v572
      %v1265 = vpop.f32.mrb[0].mxu0
      %v1266 = vadd.f32 0.0, %v1265
      %v1267 = vpop.f32.mrb[0].mxu0
      %1268 = vdwg.mxu0
      %1269 = vmatprep.subr.mxu0 0.0
      %1270 = vmatpush1.msra.mxu0 %v1163
      %1271 = vmatprep.subr.mxu0 0.0
      %1272 = vmatpush1.msra.mxu0 0.0
      %1273 = vmatprep.subr.mxu0 0.0
      %1274 = vmatpush1.msra.mxu0 0.0
      %1275 = vmatprep.subr.mxu0 0.0
      %1276 = vmatpush1.msra.mxu0 0.0
      %1277 = vmatprep.subr.mxu0 0.0
      %1278 = vmatpush1.msra.mxu0 0.0
      %1279 = vmatprep.subr.mxu0 0.0
      %1280 = vmatpush1.msra.mxu0 0.0
      %1281 = vmatprep.subr.mxu0 0.0
      %1282 = vmatpush1.msra.mxu0 0.0
      %1283 = vmatprep.subr.mxu0 0.0
      %1284 = vmatpush1.msra.mxu0 0.0
      %1285 = vmatprep.subr.mxu0 0.0
      %1286 = vmatpush1.msra.mxu0 0.0
      %1287 = vmatprep.subr.mxu0 0.0
      %1288 = vmatpush1.msra.mxu0 0.0
      %1289 = vmatprep.subr.mxu0 0.0
      %1290 = vmatpush1.msra.mxu0 0.0
      %1291 = vmatprep.subr.mxu0 0.0
      %1292 = vmatpush1.msra.mxu0 0.0
      %1293 = vmatprep.subr.mxu0 0.0
      %1294 = vmatpush1.msra.mxu0 0.0
      %1295 = vmatprep.subr.mxu0 0.0
      %1296 = vmatpush1.msra.mxu0 0.0
      %1297 = vmatprep.subr.mxu0 0.0
      %1298 = vmatpush1.msra.mxu0 0.0
      %1299 = vmatprep.subr.mxu0 0.0
      %1300 = vmatpush1.msra.mxu0 0.0
      %1301 = vmatprep.subr.mxu0 0.0
      %1302 = vmatpush1.msra.mxu0 0.0
      %1303 = vmatprep.subr.mxu0 0.0
      %1304 = vmatpush1.msra.mxu0 0.0
      %1305 = vmatprep.subr.mxu0 0.0
      %1306 = vmatpush1.msra.mxu0 0.0
      %1307 = vmatprep.subr.mxu0 0.0
      %1308 = vmatpush1.msra.mxu0 0.0
      %1309 = vmatprep.subr.mxu0 0.0
      %1310 = vmatpush1.msra.mxu0 0.0
      %1311 = vmatprep.subr.mxu0 0.0
      %1312 = vmatpush1.msra.mxu0 0.0
      %1313 = vmatprep.subr.mxu0 0.0
      %1314 = vmatpush1.msra.mxu0 0.0
      %1315 = vmatprep.subr.mxu0 0.0
      %1316 = vmatpush1.msra.mxu0 0.0
      %1317 = vmatprep.subr.mxu0 0.0
      %1318 = vmatpush1.msra.mxu0 0.0
      %1319 = vmatprep.subr.mxu0 0.0
      %1320 = vmatpush1.msra.mxu0 0.0
      %1321 = vmatprep.subr.mxu0 0.0
      %1322 = vmatpush1.msra.mxu0 0.0
      %1323 = vmatprep.subr.mxu0 0.0
      %1324 = vmatpush1.msra.mxu0 0.0
      %1325 = vmatprep.subr.mxu0 0.0
      %1326 = vmatpush1.msra.mxu0 0.0
      %1327 = vmatprep.subr.mxu0 0.0
      %1328 = vmatpush1.msra.mxu0 0.0
      %1329 = vmatprep.subr.mxu0 0.0
      %1330 = vmatpush1.msra.mxu0 0.0
      %1331 = vmatprep.subr.mxu0 0.0
      %1332 = vmatpush1.msra.mxu0 0.0
      %1333 = vmatprep.mubr.f32.mxu0 0.0
      %1334 = vmatmul.mubr.f32.gmra.mrb[0].mxu0 %v680
      %v1335 = vpop.f32.mrb[0].mxu0
      %v1336 = vadd.f32 0.0, %v1335
      %v1337 = vpop.f32.mrb[0].mxu0
      %1338 = vmatprep.mubr.f32.mxu0 0.0
      %1339 = vmatmul.mubr.f32.gmra.mrb[0].mxu0 %v683
      %v1340 = vpop.f32.mrb[0].mxu0
      %v1341 = vadd.f32 0.0, %v1340
      %v1342 = vpop.f32.mrb[0].mxu0
      %1343 = vmatprep.mubr.f32.mxu0 0.0
      %1344 = vmatmul.mubr.f32.gmra.mrb[0].mxu0 %v686
      %v1345 = vpop.f32.mrb[0].mxu0
      %v1346 = vadd.f32 0.0, %v1345
      %v1347 = vpop.f32.mrb[0].mxu0
      %1348 = vmatprep.mubr.f32.mxu0 0.0
      %1349 = vmatmul.mubr.f32.gmra.mrb[0].mxu0 %v689
      %v1350 = vpop.f32.mrb[0].mxu0
      %v1351 = vadd.f32 0.0, %v1350
      %v1352 = vpop.f32.mrb[0].mxu0
      %1353 = vmatprep.mubr.f32.mxu0 0.0
      %1354 = vmatmul.mubr.f32.gmra.mrb[0].mxu0 %v692
      %v1355 = vpop.f32.mrb[0].mxu0
      %v1356 = vadd.f32 0.0, %v1355
      %v1357 = vpop.f32.mrb[0].mxu0
      %1358 = vmatprep.mubr.f32.mxu0 0.0
      %1359 = vmatmul.mubr.f32.gmra.mrb[0].mxu0 %v695
      %v1360 = vpop.f32.mrb[0].mxu0
      %v1361 = vadd.f32 0.0, %v1360
      %v1362 = vpop.f32.mrb[0].mxu0
      %1363 = vmatprep.mubr.f32.mxu0 0.0
      %1364 = vmatmul.mubr.f32.gmra.mrb[0].mxu0 %v698
      %v1365 = vpop.f32.mrb[0].mxu0
      %v1366 = vadd.f32 0.0, %v1365
      %v1367 = vpop.f32.mrb[0].mxu0
      %1368 = vmatprep.mubr.f32.mxu0 0.0
      %1369 = vmatmul.mubr.f32.gmra.mrb[0].mxu0 %v701
      %v1370 = vpop.f32.mrb[0].mxu0
      %v1371 = vadd.f32 0.0, %v1370
      %v1372 = vpop.f32.mrb[0].mxu0
      %1373 = vdwg.mxu0
      %1382 = vrot.lane.b32.xlu0 %v1336, 8
      %v1383 = vpop.permute.xlu0 %1382
      %1384 = vrot.lane.b32.xlu0 %v1341, 8
      %v1385 = vpop.permute.xlu0 %1384
      %1386 = vrot.lane.b32.xlu0 %v1346, 8
      %v1387 = vpop.permute.xlu0 %1386
      %1388 = vrot.lane.b32.xlu0 %v1351, 8
      %v1389 = vpop.permute.xlu0 %1388
      %1390 = vrot.lane.b32.xlu0 %v1356, 8
      %v1391 = vpop.permute.xlu0 %1390
      %1392 = vrot.lane.b32.xlu0 %v1361, 8
      %v1393 = vpop.permute.xlu0 %1392
      %1394 = vrot.lane.b32.xlu0 %v1366, 8
      %v1395 = vpop.permute.xlu0 %1394
      %1396 = vrot.lane.b32.xlu0 %v1371, 8
      %v1397 = vpop.permute.xlu0 %1396
      %v1406 = vsel %vm376, %v1231, %v1383
      %v1407 = vsel %vm376, %v1236, %v1385
      %v1408 = vsel %vm376, %v1241, %v1387
      %v1409 = vsel %vm376, %v1246, %v1389
      %v1410 = vsel %vm376, %v1251, %v1391
      %v1411 = vsel %vm376, %v1256, %v1393
      %v1412 = vsel %vm376, %v1261, %v1395
      %v1413 = vsel %vm376, %v1266, %v1397
      %v1415 = vsel %vm848, %v1406, 0
      %v1418 = vsel %vm848, %v1407, 0
      %v1421 = vsel %vm848, %v1408, 0
      %v1424 = vsel %vm848, %v1409, 0
      %v1427 = vsel %vm848, %v1410, 0
      %v1430 = vsel %vm848, %v1411, 0
      %v1433 = vsel %vm848, %v1412, 0
      %v1436 = vsel %vm848, %v1413, 0
      %1438 = vmatprep.subr.mxu0 0.0
      %1439 = vmatpush1.msra.mxu0 %v371
      %1440 = vmatprep.subr.mxu0 0.0
      %1441 = vmatpush1.msra.mxu0 %v372
      %1442 = vmatprep.subr.mxu0 0.0
      %1443 = vmatpush1.msra.mxu0 0.0
      %1444 = vmatprep.subr.mxu0 0.0
      %1445 = vmatpush1.msra.mxu0 0.0
      %1446 = vmatprep.subr.mxu0 0.0
      %1447 = vmatpush1.msra.mxu0 0.0
      %1448 = vmatprep.subr.mxu0 0.0
      %1449 = vmatpush1.msra.mxu0 0.0
      %1450 = vmatprep.subr.mxu0 0.0
      %1451 = vmatpush1.msra.mxu0 0.0
      %1452 = vmatprep.subr.mxu0 0.0
      %1453 = vmatpush1.msra.mxu0 0.0
      %1454 = vmatprep.subr.mxu0 0.0
      %1455 = vmatpush1.msra.mxu0 0.0
      %1456 = vmatprep.subr.mxu0 0.0
      %1457 = vmatpush1.msra.mxu0 0.0
      %1458 = vmatprep.subr.mxu0 0.0
      %1459 = vmatpush1.msra.mxu0 0.0
      %1460 = vmatprep.subr.mxu0 0.0
      %1461 = vmatpush1.msra.mxu0 0.0
      %1462 = vmatprep.subr.mxu0 0.0
      %1463 = vmatpush1.msra.mxu0 0.0
      %1464 = vmatprep.subr.mxu0 0.0
      %1465 = vmatpush1.msra.mxu0 0.0
      %1466 = vmatprep.subr.mxu0 0.0
      %1467 = vmatpush1.msra.mxu0 0.0
      %1468 = vmatprep.subr.mxu0 0.0
      %1469 = vmatpush1.msra.mxu0 0.0
      %1470 = vmatprep.subr.mxu0 0.0
      %1471 = vmatpush1.msra.mxu0 0.0
      %1472 = vmatprep.subr.mxu0 0.0
      %1473 = vmatpush1.msra.mxu0 0.0
      %1474 = vmatprep.subr.mxu0 0.0
      %1475 = vmatpush1.msra.mxu0 0.0
      %1476 = vmatprep.subr.mxu0 0.0
      %1477 = vmatpush1.msra.mxu0 0.0
      %1478 = vmatprep.subr.mxu0 0.0
      %1479 = vmatpush1.msra.mxu0 0.0
      %1480 = vmatprep.subr.mxu0 0.0
      %1481 = vmatpush1.msra.mxu0 0.0
      %1482 = vmatprep.subr.mxu0 0.0
      %1483 = vmatpush1.msra.mxu0 0.0
      %1484 = vmatprep.subr.mxu0 0.0
      %1485 = vmatpush1.msra.mxu0 0.0
      %1486 = vmatprep.subr.mxu0 0.0
      %1487 = vmatpush1.msra.mxu0 0.0
      %1488 = vmatprep.subr.mxu0 0.0
      %1489 = vmatpush1.msra.mxu0 0.0
      %1490 = vmatprep.subr.mxu0 0.0
      %1491 = vmatpush1.msra.mxu0 0.0
      %1492 = vmatprep.subr.mxu0 0.0
      %1493 = vmatpush1.msra.mxu0 0.0
      %1494 = vmatprep.subr.mxu0 0.0
      %1495 = vmatpush1.msra.mxu0 0.0
      %1496 = vmatprep.subr.mxu0 0.0
      %1497 = vmatpush1.msra.mxu0 0.0
      %1498 = vmatprep.subr.mxu0 0.0
      %1499 = vmatpush1.msra.mxu0 0.0
      %1500 = vmatprep.subr.mxu0 0.0
      %1501 = vmatpush1.msra.mxu0 0.0
      %1502 = vmatprep.mubr.f32.mxu0 0.0
      %1503 = vmatmul.mubr.f32.gmra.mrb[0].mxu0 %v1415
      %v1504 = vpop.f32.mrb[0].mxu0
      %v1505 = vadd.f32 0.0, %v1504
      %v1506 = vpop.f32.mrb[0].mxu0
      %1507 = vmatprep.mubr.f32.mxu0 0.0
      %1508 = vmatmul.mubr.f32.gmra.mrb[0].mxu0 %v1418
      %v1509 = vpop.f32.mrb[0].mxu0
      %v1510 = vadd.f32 0.0, %v1509
      %v1511 = vpop.f32.mrb[0].mxu0
      %1512 = vmatprep.mubr.f32.mxu0 0.0
      %1513 = vmatmul.mubr.f32.gmra.mrb[0].mxu0 %v1421
      %v1514 = vpop.f32.mrb[0].mxu0
      %v1515 = vadd.f32 0.0, %v1514
      %v1516 = vpop.f32.mrb[0].mxu0
      %1517 = vmatprep.mubr.f32.mxu0 0.0
      %1518 = vmatmul.mubr.f32.gmra.mrb[0].mxu0 %v1424
      %v1519 = vpop.f32.mrb[0].mxu0
      %v1520 = vadd.f32 0.0, %v1519
      %v1521 = vpop.f32.mrb[0].mxu0
      %1522 = vmatprep.mubr.f32.mxu0 0.0
      %1523 = vmatmul.mubr.f32.gmra.mrb[0].mxu0 %v1427
      %v1524 = vpop.f32.mrb[0].mxu0
      %v1525 = vadd.f32 0.0, %v1524
      %v1526 = vpop.f32.mrb[0].mxu0
      %1527 = vmatprep.mubr.f32.mxu0 0.0
      %1528 = vmatmul.mubr.f32.gmra.mrb[0].mxu0 %v1430
      %v1529 = vpop.f32.mrb[0].mxu0
      %v1530 = vadd.f32 0.0, %v1529
      %v1531 = vpop.f32.mrb[0].mxu0
      %1532 = vmatprep.mubr.f32.mxu0 0.0
      %1533 = vmatmul.mubr.f32.gmra.mrb[0].mxu0 %v1433
      %v1534 = vpop.f32.mrb[0].mxu0
      %v1535 = vadd.f32 0.0, %v1534
      %v1536 = vpop.f32.mrb[0].mxu0
      %1537 = vmatprep.mubr.f32.mxu0 0.0
      %1538 = vmatmul.mubr.f32.gmra.mrb[0].mxu0 %v1436
      %v1539 = vpop.f32.mrb[0].mxu0
      %v1540 = vadd.f32 0.0, %v1539
      %v1541 = vpop.f32.mrb[0].mxu0
      %1542 = vdwg.mxu0
      %s1543 = scalar_lea.vmem %s266, 64
      %1544 = vst [vmem:[%s1543] sm:$0xff] %v1505
      %1545 = vst [vmem:[%s1543 + $0x8] sm:$0xff] %v1510
      %1546 = vst [vmem:[%s1543 + $0x10] sm:$0xff] %v1515
      %1547 = vst [vmem:[%s1543 + $0x18] sm:$0xff] %v1520
      %1548 = vst [vmem:[%s1543 + $0x20] sm:$0xff] %v1525
      %1549 = vst [vmem:[%s1543 + $0x28] sm:$0xff] %v1530
      %1550 = vst [vmem:[%s1543 + $0x30] sm:$0xff] %v1535
      %1551 = vst [vmem:[%s1543 + $0x38] sm:$0xff] %v1540
      %1552 = vrot.lane.b32.xlu0 %v347, 112
      %v1553 = vpop.permute.xlu0 %1552
      %1554 = vrot.lane.b32.xlu0 %v347, 80
      %v1555 = vpop.permute.xlu0 %1554
      %v1556 = vsel %vm376, %v1553, 0
      %v1558 = vsel %vm376, %v1555, 0
      %1560 = vmatprep.subr.mxu0 0.0
      %1561 = vmatpush1.xpose.msra.mxu0 %v1558
      %1562 = vmatprep.subr.mxu0 0.0
      %1563 = vmatpush1.xpose.msra.mxu0 0.0
      %1564 = vmatprep.subr.mxu0 0.0
      %1565 = vmatpush1.xpose.msra.mxu0 0.0
      %1566 = vmatprep.subr.mxu0 0.0
      %1567 = vmatpush1.xpose.msra.mxu0 0.0
      %1568 = vmatprep.subr.mxu0 0.0
      %1569 = vmatpush1.xpose.msra.mxu0 0.0
      %1570 = vmatprep.subr.mxu0 0.0
      %1571 = vmatpush1.xpose.msra.mxu0 0.0
      %1572 = vmatprep.subr.mxu0 0.0
      %1573 = vmatpush1.xpose.msra.mxu0 0.0
      %1574 = vmatprep.subr.mxu0 0.0
      %1575 = vmatpush1.xpose.msra.mxu0 0.0
      %1576 = vmatprep.subr.mxu0 0.0
      %1577 = vmatpush1.xpose.msra.mxu0 0.0
      %1578 = vmatprep.subr.mxu0 0.0
      %1579 = vmatpush1.xpose.msra.mxu0 0.0
      %1580 = vmatprep.subr.mxu0 0.0
      %1581 = vmatpush1.xpose.msra.mxu0 0.0
      %1582 = vmatprep.subr.mxu0 0.0
      %1583 = vmatpush1.xpose.msra.mxu0 0.0
      %1584 = vmatprep.subr.mxu0 0.0
      %1585 = vmatpush1.xpose.msra.mxu0 0.0
      %1586 = vmatprep.subr.mxu0 0.0
      %1587 = vmatpush1.xpose.msra.mxu0 0.0
      %1588 = vmatprep.subr.mxu0 0.0
      %1589 = vmatpush1.xpose.msra.mxu0 0.0
      %1590 = vmatprep.subr.mxu0 0.0
      %1591 = vmatpush1.xpose.msra.mxu0 0.0
      %1592 = vmatprep.subr.mxu0 0.0
      %1593 = vmatpush1.xpose.msra.mxu0 0.0
      %1594 = vmatprep.subr.mxu0 0.0
      %1595 = vmatpush1.xpose.msra.mxu0 0.0
      %1596 = vmatprep.subr.mxu0 0.0
      %1597 = vmatpush1.xpose.msra.mxu0 0.0
      %1598 = vmatprep.subr.mxu0 0.0
      %1599 = vmatpush1.xpose.msra.mxu0 0.0
      %1600 = vmatprep.subr.mxu0 0.0
      %1601 = vmatpush1.xpose.msra.mxu0 0.0
      %1602 = vmatprep.subr.mxu0 0.0
      %1603 = vmatpush1.xpose.msra.mxu0 0.0
      %1604 = vmatprep.subr.mxu0 0.0
      %1605 = vmatpush1.xpose.msra.mxu0 0.0
      %1606 = vmatprep.subr.mxu0 0.0
      %1607 = vmatpush1.xpose.msra.mxu0 0.0
      %1608 = vmatprep.subr.mxu0 0.0
      %1609 = vmatpush1.xpose.msra.mxu0 0.0
      %1610 = vmatprep.subr.mxu0 0.0
      %1611 = vmatpush1.xpose.msra.mxu0 0.0
      %1612 = vmatprep.subr.mxu0 0.0
      %1613 = vmatpush1.xpose.msra.mxu0 0.0
      %1614 = vmatprep.subr.mxu0 0.0
      %1615 = vmatpush1.xpose.msra.mxu0 0.0
      %1616 = vmatprep.subr.mxu0 0.0
      %1617 = vmatpush1.xpose.msra.mxu0 0.0
      %1618 = vmatprep.subr.mxu0 0.0
      %1619 = vmatpush1.xpose.msra.mxu0 0.0
      %1620 = vmatprep.subr.mxu0 0.0
      %1621 = vmatpush1.xpose.msra.mxu0 0.0
      %1622 = vmatprep.subr.mxu0 0.0
      %1623 = vmatpush1.xpose.msra.mxu0 0.0
      %1624 = vmatprep.mubr.f32.mxu0 0.0
      %1625 = vmatmul.mubr.f32.gmra.mrb[0].mxu0 %v1556
      %v1626 = vpop.f32.mrb[0].mxu0
      %v1627 = vadd.f32 0.0, %v1626
      %v1628 = vpop.f32.mrb[0].mxu0
      %1629 = vdwg.mxu0
      %v1630 = vsel %vm376, %v1627, -inf
      %1631 = vmax.xlane.f32.xlu0 %v1630
      %v1632 = vpop.xlane.xlu0 %1631
      %v1633 = vsub.f32 %v1627, %v1632
      %v1634 = vmul.f32 %v1633, 1.442695
      %v1635 = vpow.pop %v1634
      %v1636 = vsel %vm376, %v1635, 0.0
      %1637 = vadd.xlane.f32.xlu0 %v1636
      %v1638 = vpop.xlane.xlu0 %1637
      %v1639 = vrcp.pop %v1638
      %v1640 = vmul.f32 %v1635, %v1639
      %1641 = vrot.lane.b32.xlu0 %v352, 112
      %v1642 = vpop.permute.xlu0 %1641
      %1643 = vrot.lane.b32.xlu0 %v352, 80
      %v1644 = vpop.permute.xlu0 %1643
      %v1645 = vsel %vm376, %v1642, 0
      %v1647 = vsel %vm376, %v1644, 0
      %1649 = vmatprep.subr.mxu0 0.0
      %1650 = vmatpush1.xpose.msra.mxu0 %v1647
      %1651 = vmatprep.subr.mxu0 0.0
      %1652 = vmatpush1.xpose.msra.mxu0 0.0
      %1653 = vmatprep.subr.mxu0 0.0
      %1654 = vmatpush1.xpose.msra.mxu0 0.0
      %1655 = vmatprep.subr.mxu0 0.0
      %1656 = vmatpush1.xpose.msra.mxu0 0.0
      %1657 = vmatprep.subr.mxu0 0.0
      %1658 = vmatpush1.xpose.msra.mxu0 0.0
      %1659 = vmatprep.subr.mxu0 0.0
      %1660 = vmatpush1.xpose.msra.mxu0 0.0
      %1661 = vmatprep.subr.mxu0 0.0
      %1662 = vmatpush1.xpose.msra.mxu0 0.0
      %1663 = vmatprep.subr.mxu0 0.0
      %1664 = vmatpush1.xpose.msra.mxu0 0.0
      %1665 = vmatprep.subr.mxu0 0.0
      %1666 = vmatpush1.xpose.msra.mxu0 0.0
      %1667 = vmatprep.subr.mxu0 0.0
      %1668 = vmatpush1.xpose.msra.mxu0 0.0
      %1669 = vmatprep.subr.mxu0 0.0
      %1670 = vmatpush1.xpose.msra.mxu0 0.0
      %1671 = vmatprep.subr.mxu0 0.0
      %1672 = vmatpush1.xpose.msra.mxu0 0.0
      %1673 = vmatprep.subr.mxu0 0.0
      %1674 = vmatpush1.xpose.msra.mxu0 0.0
      %1675 = vmatprep.subr.mxu0 0.0
      %1676 = vmatpush1.xpose.msra.mxu0 0.0
      %1677 = vmatprep.subr.mxu0 0.0
      %1678 = vmatpush1.xpose.msra.mxu0 0.0
      %1679 = vmatprep.subr.mxu0 0.0
      %1680 = vmatpush1.xpose.msra.mxu0 0.0
      %1681 = vmatprep.subr.mxu0 0.0
      %1682 = vmatpush1.xpose.msra.mxu0 0.0
      %1683 = vmatprep.subr.mxu0 0.0
      %1684 = vmatpush1.xpose.msra.mxu0 0.0
      %1685 = vmatprep.subr.mxu0 0.0
      %1686 = vmatpush1.xpose.msra.mxu0 0.0
      %1687 = vmatprep.subr.mxu0 0.0
      %1688 = vmatpush1.xpose.msra.mxu0 0.0
      %1689 = vmatprep.subr.mxu0 0.0
      %1690 = vmatpush1.xpose.msra.mxu0 0.0
      %1691 = vmatprep.subr.mxu0 0.0
      %1692 = vmatpush1.xpose.msra.mxu0 0.0
      %1693 = vmatprep.subr.mxu0 0.0
      %1694 = vmatpush1.xpose.msra.mxu0 0.0
      %1695 = vmatprep.subr.mxu0 0.0
      %1696 = vmatpush1.xpose.msra.mxu0 0.0
      %1697 = vmatprep.subr.mxu0 0.0
      %1698 = vmatpush1.xpose.msra.mxu0 0.0
      %1699 = vmatprep.subr.mxu0 0.0
      %1700 = vmatpush1.xpose.msra.mxu0 0.0
      %1701 = vmatprep.subr.mxu0 0.0
      %1702 = vmatpush1.xpose.msra.mxu0 0.0
      %1703 = vmatprep.subr.mxu0 0.0
      %1704 = vmatpush1.xpose.msra.mxu0 0.0
      %1705 = vmatprep.subr.mxu0 0.0
      %1706 = vmatpush1.xpose.msra.mxu0 0.0
      %1707 = vmatprep.subr.mxu0 0.0
      %1708 = vmatpush1.xpose.msra.mxu0 0.0
      %1709 = vmatprep.subr.mxu0 0.0
      %1710 = vmatpush1.xpose.msra.mxu0 0.0
      %1711 = vmatprep.subr.mxu0 0.0
      %1712 = vmatpush1.xpose.msra.mxu0 0.0
      %1713 = vmatprep.mubr.f32.mxu0 0.0
      %1714 = vmatmul.mubr.f32.gmra.mrb[0].mxu0 %v1645
      %v1715 = vpop.f32.mrb[0].mxu0
      %v1716 = vadd.f32 0.0, %v1715
      %v1717 = vpop.f32.mrb[0].mxu0
      %1718 = vdwg.mxu0
      %v1719 = vsel %vm376, %v1716, -inf
      %1720 = vmax.xlane.f32.xlu0 %v1719
      %v1721 = vpop.xlane.xlu0 %1720
      %v1722 = vsub.f32 %v1716, %v1721
      %v1723 = vmul.f32 %v1722, 1.442695
      %v1724 = vpow.pop %v1723
      %v1725 = vsel %vm376, %v1724, 0.0
      %1726 = vadd.xlane.f32.xlu0 %v1725
      %v1727 = vpop.xlane.xlu0 %1726
      %v1728 = vrcp.pop %v1727
      %v1729 = vmul.f32 %v1724, %v1728
      %1730 = vmatprep.subr.mxu0 0.0
      %1731 = vmatpush1.msra.mxu0 %v1640
      %1732 = vmatprep.subr.mxu0 0.0
      %1733 = vmatpush1.msra.mxu0 0.0
      %1734 = vmatprep.subr.mxu0 0.0
      %1735 = vmatpush1.msra.mxu0 0.0
      %1736 = vmatprep.subr.mxu0 0.0
      %1737 = vmatpush1.msra.mxu0 0.0
      %1738 = vmatprep.subr.mxu0 0.0
      %1739 = vmatpush1.msra.mxu0 0.0
      %1740 = vmatprep.subr.mxu0 0.0
      %1741 = vmatpush1.msra.mxu0 0.0
      %1742 = vmatprep.subr.mxu0 0.0
      %1743 = vmatpush1.msra.mxu0 0.0
      %1744 = vmatprep.subr.mxu0 0.0
      %1745 = vmatpush1.msra.mxu0 0.0
      %1746 = vmatprep.subr.mxu0 0.0
      %1747 = vmatpush1.msra.mxu0 0.0
      %1748 = vmatprep.subr.mxu0 0.0
      %1749 = vmatpush1.msra.mxu0 0.0
      %1750 = vmatprep.subr.mxu0 0.0
      %1751 = vmatpush1.msra.mxu0 0.0
      %1752 = vmatprep.subr.mxu0 0.0
      %1753 = vmatpush1.msra.mxu0 0.0
      %1754 = vmatprep.subr.mxu0 0.0
      %1755 = vmatpush1.msra.mxu0 0.0
      %1756 = vmatprep.subr.mxu0 0.0
      %1757 = vmatpush1.msra.mxu0 0.0
      %1758 = vmatprep.subr.mxu0 0.0
      %1759 = vmatpush1.msra.mxu0 0.0
      %1760 = vmatprep.subr.mxu0 0.0
      %1761 = vmatpush1.msra.mxu0 0.0
      %1762 = vmatprep.subr.mxu0 0.0
      %1763 = vmatpush1.msra.mxu0 0.0
      %1764 = vmatprep.subr.mxu0 0.0
      %1765 = vmatpush1.msra.mxu0 0.0
      %1766 = vmatprep.subr.mxu0 0.0
      %1767 = vmatpush1.msra.mxu0 0.0
      %1768 = vmatprep.subr.mxu0 0.0
      %1769 = vmatpush1.msra.mxu0 0.0
      %1770 = vmatprep.subr.mxu0 0.0
      %1771 = vmatpush1.msra.mxu0 0.0
      %1772 = vmatprep.subr.mxu0 0.0
      %1773 = vmatpush1.msra.mxu0 0.0
      %1774 = vmatprep.subr.mxu0 0.0
      %1775 = vmatpush1.msra.mxu0 0.0
      %1776 = vmatprep.subr.mxu0 0.0
      %1777 = vmatpush1.msra.mxu0 0.0
      %1778 = vmatprep.subr.mxu0 0.0
      %1779 = vmatpush1.msra.mxu0 0.0
      %1780 = vmatprep.subr.mxu0 0.0
      %1781 = vmatpush1.msra.mxu0 0.0
      %1782 = vmatprep.subr.mxu0 0.0
      %1783 = vmatpush1.msra.mxu0 0.0
      %1784 = vmatprep.subr.mxu0 0.0
      %1785 = vmatpush1.msra.mxu0 0.0
      %1786 = vmatprep.subr.mxu0 0.0
      %1787 = vmatpush1.msra.mxu0 0.0
      %1788 = vmatprep.subr.mxu0 0.0
      %1789 = vmatpush1.msra.mxu0 0.0
      %1790 = vmatprep.subr.mxu0 0.0
      %1791 = vmatpush1.msra.mxu0 0.0
      %1792 = vmatprep.subr.mxu0 0.0
      %1793 = vmatpush1.msra.mxu0 0.0
      %1794 = vmatprep.mubr.f32.mxu0 0.0
      %1795 = vmatmul.mubr.f32.gmra.mrb[0].mxu0 %v551
      %v1796 = vpop.f32.mrb[0].mxu0
      %v1797 = vadd.f32 0.0, %v1796
      %v1798 = vpop.f32.mrb[0].mxu0
      %1799 = vmatprep.mubr.f32.mxu0 0.0
      %1800 = vmatmul.mubr.f32.gmra.mrb[0].mxu0 %v554
      %v1801 = vpop.f32.mrb[0].mxu0
      %v1802 = vadd.f32 0.0, %v1801
      %v1803 = vpop.f32.mrb[0].mxu0
      %1804 = vmatprep.mubr.f32.mxu0 0.0
      %1805 = vmatmul.mubr.f32.gmra.mrb[0].mxu0 %v557
      %v1806 = vpop.f32.mrb[0].mxu0
      %v1807 = vadd.f32 0.0, %v1806
      %v1808 = vpop.f32.mrb[0].mxu0
      %1809 = vmatprep.mubr.f32.mxu0 0.0
      %1810 = vmatmul.mubr.f32.gmra.mrb[0].mxu0 %v560
      %v1811 = vpop.f32.mrb[0].mxu0
      %v1812 = vadd.f32 0.0, %v1811
      %v1813 = vpop.f32.mrb[0].mxu0
      %1814 = vmatprep.mubr.f32.mxu0 0.0
      %1815 = vmatmul.mubr.f32.gmra.mrb[0].mxu0 %v563
      %v1816 = vpop.f32.mrb[0].mxu0
      %v1817 = vadd.f32 0.0, %v1816
      %v1818 = vpop.f32.mrb[0].mxu0
      %1819 = vmatprep.mubr.f32.mxu0 0.0
      %1820 = vmatmul.mubr.f32.gmra.mrb[0].mxu0 %v566
      %v1821 = vpop.f32.mrb[0].mxu0
      %v1822 = vadd.f32 0.0, %v1821
      %v1823 = vpop.f32.mrb[0].mxu0
      %1824 = vmatprep.mubr.f32.mxu0 0.0
      %1825 = vmatmul.mubr.f32.gmra.mrb[0].mxu0 %v569
      %v1826 = vpop.f32.mrb[0].mxu0
      %v1827 = vadd.f32 0.0, %v1826
      %v1828 = vpop.f32.mrb[0].mxu0
      %1829 = vmatprep.mubr.f32.mxu0 0.0
      %1830 = vmatmul.mubr.f32.gmra.mrb[0].mxu0 %v572
      %v1831 = vpop.f32.mrb[0].mxu0
      %v1832 = vadd.f32 0.0, %v1831
      %v1833 = vpop.f32.mrb[0].mxu0
      %1834 = vdwg.mxu0
      %1835 = vmatprep.subr.mxu0 0.0
      %1836 = vmatpush1.msra.mxu0 %v1729
      %1837 = vmatprep.subr.mxu0 0.0
      %1838 = vmatpush1.msra.mxu0 0.0
      %1839 = vmatprep.subr.mxu0 0.0
      %1840 = vmatpush1.msra.mxu0 0.0
      %1841 = vmatprep.subr.mxu0 0.0
      %1842 = vmatpush1.msra.mxu0 0.0
      %1843 = vmatprep.subr.mxu0 0.0
      %1844 = vmatpush1.msra.mxu0 0.0
      %1845 = vmatprep.subr.mxu0 0.0
      %1846 = vmatpush1.msra.mxu0 0.0
      %1847 = vmatprep.subr.mxu0 0.0
      %1848 = vmatpush1.msra.mxu0 0.0
      %1849 = vmatprep.subr.mxu0 0.0
      %1850 = vmatpush1.msra.mxu0 0.0
      %1851 = vmatprep.subr.mxu0 0.0
      %1852 = vmatpush1.msra.mxu0 0.0
      %1853 = vmatprep.subr.mxu0 0.0
      %1854 = vmatpush1.msra.mxu0 0.0
      %1855 = vmatprep.subr.mxu0 0.0
      %1856 = vmatpush1.msra.mxu0 0.0
      %1857 = vmatprep.subr.mxu0 0.0
      %1858 = vmatpush1.msra.mxu0 0.0
      %1859 = vmatprep.subr.mxu0 0.0
      %1860 = vmatpush1.msra.mxu0 0.0
      %1861 = vmatprep.subr.mxu0 0.0
      %1862 = vmatpush1.msra.mxu0 0.0
      %1863 = vmatprep.subr.mxu0 0.0
      %1864 = vmatpush1.msra.mxu0 0.0
      %1865 = vmatprep.subr.mxu0 0.0
      %1866 = vmatpush1.msra.mxu0 0.0
      %1867 = vmatprep.subr.mxu0 0.0
      %1868 = vmatpush1.msra.mxu0 0.0
      %1869 = vmatprep.subr.mxu0 0.0
      %1870 = vmatpush1.msra.mxu0 0.0
      %1871 = vmatprep.subr.mxu0 0.0
      %1872 = vmatpush1.msra.mxu0 0.0
      %1873 = vmatprep.subr.mxu0 0.0
      %1874 = vmatpush1.msra.mxu0 0.0
      %1875 = vmatprep.subr.mxu0 0.0
      %1876 = vmatpush1.msra.mxu0 0.0
      %1877 = vmatprep.subr.mxu0 0.0
      %1878 = vmatpush1.msra.mxu0 0.0
      %1879 = vmatprep.subr.mxu0 0.0
      %1880 = vmatpush1.msra.mxu0 0.0
      %1881 = vmatprep.subr.mxu0 0.0
      %1882 = vmatpush1.msra.mxu0 0.0
      %1883 = vmatprep.subr.mxu0 0.0
      %1884 = vmatpush1.msra.mxu0 0.0
      %1885 = vmatprep.subr.mxu0 0.0
      %1886 = vmatpush1.msra.mxu0 0.0
      %1887 = vmatprep.subr.mxu0 0.0
      %1888 = vmatpush1.msra.mxu0 0.0
      %1889 = vmatprep.subr.mxu0 0.0
      %1890 = vmatpush1.msra.mxu0 0.0
      %1891 = vmatprep.subr.mxu0 0.0
      %1892 = vmatpush1.msra.mxu0 0.0
      %1893 = vmatprep.subr.mxu0 0.0
      %1894 = vmatpush1.msra.mxu0 0.0
      %1895 = vmatprep.subr.mxu0 0.0
      %1896 = vmatpush1.msra.mxu0 0.0
      %1897 = vmatprep.subr.mxu0 0.0
      %1898 = vmatpush1.msra.mxu0 0.0
      %1899 = vmatprep.mubr.f32.mxu0 0.0
      %1900 = vmatmul.mubr.f32.gmra.mrb[0].mxu0 %v680
      %v1901 = vpop.f32.mrb[0].mxu0
      %v1902 = vadd.f32 0.0, %v1901
      %v1903 = vpop.f32.mrb[0].mxu0
      %1904 = vmatprep.mubr.f32.mxu0 0.0
      %1905 = vmatmul.mubr.f32.gmra.mrb[0].mxu0 %v683
      %v1906 = vpop.f32.mrb[0].mxu0
      %v1907 = vadd.f32 0.0, %v1906
      %v1908 = vpop.f32.mrb[0].mxu0
      %1909 = vmatprep.mubr.f32.mxu0 0.0
      %1910 = vmatmul.mubr.f32.gmra.mrb[0].mxu0 %v686
      %v1911 = vpop.f32.mrb[0].mxu0
      %v1912 = vadd.f32 0.0, %v1911
      %v1913 = vpop.f32.mrb[0].mxu0
      %1914 = vmatprep.mubr.f32.mxu0 0.0
      %1915 = vmatmul.mubr.f32.gmra.mrb[0].mxu0 %v689
      %v1916 = vpop.f32.mrb[0].mxu0
      %v1917 = vadd.f32 0.0, %v1916
      %v1918 = vpop.f32.mrb[0].mxu0
      %1919 = vmatprep.mubr.f32.mxu0 0.0
      %1920 = vmatmul.mubr.f32.gmra.mrb[0].mxu0 %v692
      %v1921 = vpop.f32.mrb[0].mxu0
      %v1922 = vadd.f32 0.0, %v1921
      %v1923 = vpop.f32.mrb[0].mxu0
      %1924 = vmatprep.mubr.f32.mxu0 0.0
      %1925 = vmatmul.mubr.f32.gmra.mrb[0].mxu0 %v695
      %v1926 = vpop.f32.mrb[0].mxu0
      %v1927 = vadd.f32 0.0, %v1926
      %v1928 = vpop.f32.mrb[0].mxu0
      %1929 = vmatprep.mubr.f32.mxu0 0.0
      %1930 = vmatmul.mubr.f32.gmra.mrb[0].mxu0 %v698
      %v1931 = vpop.f32.mrb[0].mxu0
      %v1932 = vadd.f32 0.0, %v1931
      %v1933 = vpop.f32.mrb[0].mxu0
      %1934 = vmatprep.mubr.f32.mxu0 0.0
      %1935 = vmatmul.mubr.f32.gmra.mrb[0].mxu0 %v701
      %v1936 = vpop.f32.mrb[0].mxu0
      %v1937 = vadd.f32 0.0, %v1936
      %v1938 = vpop.f32.mrb[0].mxu0
      %1939 = vdwg.mxu0
      %1948 = vrot.lane.b32.xlu0 %v1902, 8
      %v1949 = vpop.permute.xlu0 %1948
      %1950 = vrot.lane.b32.xlu0 %v1907, 8
      %v1951 = vpop.permute.xlu0 %1950
      %1952 = vrot.lane.b32.xlu0 %v1912, 8
      %v1953 = vpop.permute.xlu0 %1952
      %1954 = vrot.lane.b32.xlu0 %v1917, 8
      %v1955 = vpop.permute.xlu0 %1954
      %1956 = vrot.lane.b32.xlu0 %v1922, 8
      %v1957 = vpop.permute.xlu0 %1956
      %1958 = vrot.lane.b32.xlu0 %v1927, 8
      %v1959 = vpop.permute.xlu0 %1958
      %1960 = vrot.lane.b32.xlu0 %v1932, 8
      %v1961 = vpop.permute.xlu0 %1960
      %1962 = vrot.lane.b32.xlu0 %v1937, 8
      %v1963 = vpop.permute.xlu0 %1962
      %v1972 = vsel %vm376, %v1797, %v1949
      %v1973 = vsel %vm376, %v1802, %v1951
      %v1974 = vsel %vm376, %v1807, %v1953
      %v1975 = vsel %vm376, %v1812, %v1955
      %v1976 = vsel %vm376, %v1817, %v1957
      %v1977 = vsel %vm376, %v1822, %v1959
      %v1978 = vsel %vm376, %v1827, %v1961
      %v1979 = vsel %vm376, %v1832, %v1963
      %v1981 = vsel %vm848, %v1972, 0
      %v1984 = vsel %vm848, %v1973, 0
      %v1987 = vsel %vm848, %v1974, 0
      %v1990 = vsel %vm848, %v1975, 0
      %v1993 = vsel %vm848, %v1976, 0
      %v1996 = vsel %vm848, %v1977, 0
      %v1999 = vsel %vm848, %v1978, 0
      %v2002 = vsel %vm848, %v1979, 0
      %2004 = vmatprep.subr.mxu0 0.0
      %2005 = vmatpush1.msra.mxu0 %v371
      %2006 = vmatprep.subr.mxu0 0.0
      %2007 = vmatpush1.msra.mxu0 %v372
      %2008 = vmatprep.subr.mxu0 0.0
      %2009 = vmatpush1.msra.mxu0 0.0
      %2010 = vmatprep.subr.mxu0 0.0
      %2011 = vmatpush1.msra.mxu0 0.0
      %2012 = vmatprep.subr.mxu0 0.0
      %2013 = vmatpush1.msra.mxu0 0.0
      %2014 = vmatprep.subr.mxu0 0.0
      %2015 = vmatpush1.msra.mxu0 0.0
      %2016 = vmatprep.subr.mxu0 0.0
      %2017 = vmatpush1.msra.mxu0 0.0
      %2018 = vmatprep.subr.mxu0 0.0
      %2019 = vmatpush1.msra.mxu0 0.0
      %2020 = vmatprep.subr.mxu0 0.0
      %2021 = vmatpush1.msra.mxu0 0.0
      %2022 = vmatprep.subr.mxu0 0.0
      %2023 = vmatpush1.msra.mxu0 0.0
      %2024 = vmatprep.subr.mxu0 0.0
      %2025 = vmatpush1.msra.mxu0 0.0
      %2026 = vmatprep.subr.mxu0 0.0
      %2027 = vmatpush1.msra.mxu0 0.0
      %2028 = vmatprep.subr.mxu0 0.0
      %2029 = vmatpush1.msra.mxu0 0.0
      %2030 = vmatprep.subr.mxu0 0.0
      %2031 = vmatpush1.msra.mxu0 0.0
      %2032 = vmatprep.subr.mxu0 0.0
      %2033 = vmatpush1.msra.mxu0 0.0
      %2034 = vmatprep.subr.mxu0 0.0
      %2035 = vmatpush1.msra.mxu0 0.0
      %2036 = vmatprep.subr.mxu0 0.0
      %2037 = vmatpush1.msra.mxu0 0.0
      %2038 = vmatprep.subr.mxu0 0.0
      %2039 = vmatpush1.msra.mxu0 0.0
      %2040 = vmatprep.subr.mxu0 0.0
      %2041 = vmatpush1.msra.mxu0 0.0
      %2042 = vmatprep.subr.mxu0 0.0
      %2043 = vmatpush1.msra.mxu0 0.0
      %2044 = vmatprep.subr.mxu0 0.0
      %2045 = vmatpush1.msra.mxu0 0.0
      %2046 = vmatprep.subr.mxu0 0.0
      %2047 = vmatpush1.msra.mxu0 0.0
      %2048 = vmatprep.subr.mxu0 0.0
      %2049 = vmatpush1.msra.mxu0 0.0
      %2050 = vmatprep.subr.mxu0 0.0
      %2051 = vmatpush1.msra.mxu0 0.0
      %2052 = vmatprep.subr.mxu0 0.0
      %2053 = vmatpush1.msra.mxu0 0.0
      %2054 = vmatprep.subr.mxu0 0.0
      %2055 = vmatpush1.msra.mxu0 0.0
      %2056 = vmatprep.subr.mxu0 0.0
      %2057 = vmatpush1.msra.mxu0 0.0
      %2058 = vmatprep.subr.mxu0 0.0
      %2059 = vmatpush1.msra.mxu0 0.0
      %2060 = vmatprep.subr.mxu0 0.0
      %2061 = vmatpush1.msra.mxu0 0.0
      %2062 = vmatprep.subr.mxu0 0.0
      %2063 = vmatpush1.msra.mxu0 0.0
      %2064 = vmatprep.subr.mxu0 0.0
      %2065 = vmatpush1.msra.mxu0 0.0
      %2066 = vmatprep.subr.mxu0 0.0
      %2067 = vmatpush1.msra.mxu0 0.0
      %2068 = vmatprep.mubr.f32.mxu0 0.0
      %2069 = vmatmul.mubr.f32.gmra.mrb[0].mxu0 %v1981
      %v2070 = vpop.f32.mrb[0].mxu0
      %v2071 = vadd.f32 0.0, %v2070
      %v2072 = vpop.f32.mrb[0].mxu0
      %2073 = vmatprep.mubr.f32.mxu0 0.0
      %2074 = vmatmul.mubr.f32.gmra.mrb[0].mxu0 %v1984
      %v2075 = vpop.f32.mrb[0].mxu0
      %v2076 = vadd.f32 0.0, %v2075
      %v2077 = vpop.f32.mrb[0].mxu0
      %2078 = vmatprep.mubr.f32.mxu0 0.0
      %2079 = vmatmul.mubr.f32.gmra.mrb[0].mxu0 %v1987
      %v2080 = vpop.f32.mrb[0].mxu0
      %v2081 = vadd.f32 0.0, %v2080
      %v2082 = vpop.f32.mrb[0].mxu0
      %2083 = vmatprep.mubr.f32.mxu0 0.0
      %2084 = vmatmul.mubr.f32.gmra.mrb[0].mxu0 %v1990
      %v2085 = vpop.f32.mrb[0].mxu0
      %v2086 = vadd.f32 0.0, %v2085
      %v2087 = vpop.f32.mrb[0].mxu0
      %2088 = vmatprep.mubr.f32.mxu0 0.0
      %2089 = vmatmul.mubr.f32.gmra.mrb[0].mxu0 %v1993
      %v2090 = vpop.f32.mrb[0].mxu0
      %v2091 = vadd.f32 0.0, %v2090
      %v2092 = vpop.f32.mrb[0].mxu0
      %2093 = vmatprep.mubr.f32.mxu0 0.0
      %2094 = vmatmul.mubr.f32.gmra.mrb[0].mxu0 %v1996
      %v2095 = vpop.f32.mrb[0].mxu0
      %v2096 = vadd.f32 0.0, %v2095
      %v2097 = vpop.f32.mrb[0].mxu0
      %2098 = vmatprep.mubr.f32.mxu0 0.0
      %2099 = vmatmul.mubr.f32.gmra.mrb[0].mxu0 %v1999
      %v2100 = vpop.f32.mrb[0].mxu0
      %v2101 = vadd.f32 0.0, %v2100
      %v2102 = vpop.f32.mrb[0].mxu0
      %2103 = vmatprep.mubr.f32.mxu0 0.0
      %2104 = vmatmul.mubr.f32.gmra.mrb[0].mxu0 %v2002
      %v2105 = vpop.f32.mrb[0].mxu0
      %v2106 = vadd.f32 0.0, %v2105
      %v2107 = vpop.f32.mrb[0].mxu0
      %2108 = vdwg.mxu0
      %s2109 = scalar_lea.vmem %s266, 128
      %2110 = vst [vmem:[%s2109] sm:$0xff] %v2071
      %2111 = vst [vmem:[%s2109 + $0x8] sm:$0xff] %v2076
      %2112 = vst [vmem:[%s2109 + $0x10] sm:$0xff] %v2081
      %2113 = vst [vmem:[%s2109 + $0x18] sm:$0xff] %v2086
      %2114 = vst [vmem:[%s2109 + $0x20] sm:$0xff] %v2091
      %2115 = vst [vmem:[%s2109 + $0x28] sm:$0xff] %v2096
      %2116 = vst [vmem:[%s2109 + $0x30] sm:$0xff] %v2101
      %2117 = vst [vmem:[%s2109 + $0x38] sm:$0xff] %v2106
      %2118 = vrot.lane.b32.xlu0 %v347, 104
      %v2119 = vpop.permute.xlu0 %2118
      %2120 = vrot.lane.b32.xlu0 %v347, 72
      %v2121 = vpop.permute.xlu0 %2120
      %v2122 = vsel %vm376, %v2119, 0
      %v2124 = vsel %vm376, %v2121, 0
      %2126 = vmatprep.subr.mxu0 0.0
      %2127 = vmatpush1.xpose.msra.mxu0 %v2124
      %2128 = vmatprep.subr.mxu0 0.0
      %2129 = vmatpush1.xpose.msra.mxu0 0.0
      %2130 = vmatprep.subr.mxu0 0.0
      %2131 = vmatpush1.xpose.msra.mxu0 0.0
      %2132 = vmatprep.subr.mxu0 0.0
      %2133 = vmatpush1.xpose.msra.mxu0 0.0
      %2134 = vmatprep.subr.mxu0 0.0
      %2135 = vmatpush1.xpose.msra.mxu0 0.0
      %2136 = vmatprep.subr.mxu0 0.0
      %2137 = vmatpush1.xpose.msra.mxu0 0.0
      %2138 = vmatprep.subr.mxu0 0.0
      %2139 = vmatpush1.xpose.msra.mxu0 0.0
      %2140 = vmatprep.subr.mxu0 0.0
      %2141 = vmatpush1.xpose.msra.mxu0 0.0
      %2142 = vmatprep.subr.mxu0 0.0
      %2143 = vmatpush1.xpose.msra.mxu0 0.0
      %2144 = vmatprep.subr.mxu0 0.0
      %2145 = vmatpush1.xpose.msra.mxu0 0.0
      %2146 = vmatprep.subr.mxu0 0.0
      %2147 = vmatpush1.xpose.msra.mxu0 0.0
      %2148 = vmatprep.subr.mxu0 0.0
      %2149 = vmatpush1.xpose.msra.mxu0 0.0
      %2150 = vmatprep.subr.mxu0 0.0
      %2151 = vmatpush1.xpose.msra.mxu0 0.0
      %2152 = vmatprep.subr.mxu0 0.0
      %2153 = vmatpush1.xpose.msra.mxu0 0.0
      %2154 = vmatprep.subr.mxu0 0.0
      %2155 = vmatpush1.xpose.msra.mxu0 0.0
      %2156 = vmatprep.subr.mxu0 0.0
      %2157 = vmatpush1.xpose.msra.mxu0 0.0
      %2158 = vmatprep.subr.mxu0 0.0
      %2159 = vmatpush1.xpose.msra.mxu0 0.0
      %2160 = vmatprep.subr.mxu0 0.0
      %2161 = vmatpush1.xpose.msra.mxu0 0.0
      %2162 = vmatprep.subr.mxu0 0.0
      %2163 = vmatpush1.xpose.msra.mxu0 0.0
      %2164 = vmatprep.subr.mxu0 0.0
      %2165 = vmatpush1.xpose.msra.mxu0 0.0
      %2166 = vmatprep.subr.mxu0 0.0
      %2167 = vmatpush1.xpose.msra.mxu0 0.0
      %2168 = vmatprep.subr.mxu0 0.0
      %2169 = vmatpush1.xpose.msra.mxu0 0.0
      %2170 = vmatprep.subr.mxu0 0.0
      %2171 = vmatpush1.xpose.msra.mxu0 0.0
      %2172 = vmatprep.subr.mxu0 0.0
      %2173 = vmatpush1.xpose.msra.mxu0 0.0
      %2174 = vmatprep.subr.mxu0 0.0
      %2175 = vmatpush1.xpose.msra.mxu0 0.0
      %2176 = vmatprep.subr.mxu0 0.0
      %2177 = vmatpush1.xpose.msra.mxu0 0.0
      %2178 = vmatprep.subr.mxu0 0.0
      %2179 = vmatpush1.xpose.msra.mxu0 0.0
      %2180 = vmatprep.subr.mxu0 0.0
      %2181 = vmatpush1.xpose.msra.mxu0 0.0
      %2182 = vmatprep.subr.mxu0 0.0
      %2183 = vmatpush1.xpose.msra.mxu0 0.0
      %2184 = vmatprep.subr.mxu0 0.0
      %2185 = vmatpush1.xpose.msra.mxu0 0.0
      %2186 = vmatprep.subr.mxu0 0.0
      %2187 = vmatpush1.xpose.msra.mxu0 0.0
      %2188 = vmatprep.subr.mxu0 0.0
      %2189 = vmatpush1.xpose.msra.mxu0 0.0
      %2190 = vmatprep.mubr.f32.mxu0 0.0
      %2191 = vmatmul.mubr.f32.gmra.mrb[0].mxu0 %v2122
      %v2192 = vpop.f32.mrb[0].mxu0
      %v2193 = vadd.f32 0.0, %v2192
      %v2194 = vpop.f32.mrb[0].mxu0
      %2195 = vdwg.mxu0
      %v2196 = vsel %vm376, %v2193, -inf
      %2197 = vmax.xlane.f32.xlu0 %v2196
      %v2198 = vpop.xlane.xlu0 %2197
      %v2199 = vsub.f32 %v2193, %v2198
      %v2200 = vmul.f32 %v2199, 1.442695
      %v2201 = vpow.pop %v2200
      %v2202 = vsel %vm376, %v2201, 0.0
      %2203 = vadd.xlane.f32.xlu0 %v2202
      %v2204 = vpop.xlane.xlu0 %2203
      %v2205 = vrcp.pop %v2204
      %v2206 = vmul.f32 %v2201, %v2205
      %2207 = vrot.lane.b32.xlu0 %v352, 104
      %v2208 = vpop.permute.xlu0 %2207
      %2209 = vrot.lane.b32.xlu0 %v352, 72
      %v2210 = vpop.permute.xlu0 %2209
      %v2211 = vsel %vm376, %v2208, 0
      %v2213 = vsel %vm376, %v2210, 0
      %2215 = vmatprep.subr.mxu0 0.0
      %2216 = vmatpush1.xpose.msra.mxu0 %v2213
      %2217 = vmatprep.subr.mxu0 0.0
      %2218 = vmatpush1.xpose.msra.mxu0 0.0
      %2219 = vmatprep.subr.mxu0 0.0
      %2220 = vmatpush1.xpose.msra.mxu0 0.0
      %2221 = vmatprep.subr.mxu0 0.0
      %2222 = vmatpush1.xpose.msra.mxu0 0.0
      %2223 = vmatprep.subr.mxu0 0.0
      %2224 = vmatpush1.xpose.msra.mxu0 0.0
      %2225 = vmatprep.subr.mxu0 0.0
      %2226 = vmatpush1.xpose.msra.mxu0 0.0
      %2227 = vmatprep.subr.mxu0 0.0
      %2228 = vmatpush1.xpose.msra.mxu0 0.0
      %2229 = vmatprep.subr.mxu0 0.0
      %2230 = vmatpush1.xpose.msra.mxu0 0.0
      %2231 = vmatprep.subr.mxu0 0.0
      %2232 = vmatpush1.xpose.msra.mxu0 0.0
      %2233 = vmatprep.subr.mxu0 0.0
      %2234 = vmatpush1.xpose.msra.mxu0 0.0
      %2235 = vmatprep.subr.mxu0 0.0
      %2236 = vmatpush1.xpose.msra.mxu0 0.0
      %2237 = vmatprep.subr.mxu0 0.0
      %2238 = vmatpush1.xpose.msra.mxu0 0.0
      %2239 = vmatprep.subr.mxu0 0.0
      %2240 = vmatpush1.xpose.msra.mxu0 0.0
      %2241 = vmatprep.subr.mxu0 0.0
      %2242 = vmatpush1.xpose.msra.mxu0 0.0
      %2243 = vmatprep.subr.mxu0 0.0
      %2244 = vmatpush1.xpose.msra.mxu0 0.0
      %2245 = vmatprep.subr.mxu0 0.0
      %2246 = vmatpush1.xpose.msra.mxu0 0.0
      %2247 = vmatprep.subr.mxu0 0.0
      %2248 = vmatpush1.xpose.msra.mxu0 0.0
      %2249 = vmatprep.subr.mxu0 0.0
      %2250 = vmatpush1.xpose.msra.mxu0 0.0
      %2251 = vmatprep.subr.mxu0 0.0
      %2252 = vmatpush1.xpose.msra.mxu0 0.0
      %2253 = vmatprep.subr.mxu0 0.0
      %2254 = vmatpush1.xpose.msra.mxu0 0.0
      %2255 = vmatprep.subr.mxu0 0.0
      %2256 = vmatpush1.xpose.msra.mxu0 0.0
      %2257 = vmatprep.subr.mxu0 0.0
      %2258 = vmatpush1.xpose.msra.mxu0 0.0
      %2259 = vmatprep.subr.mxu0 0.0
      %2260 = vmatpush1.xpose.msra.mxu0 0.0
      %2261 = vmatprep.subr.mxu0 0.0
      %2262 = vmatpush1.xpose.msra.mxu0 0.0
      %2263 = vmatprep.subr.mxu0 0.0
      %2264 = vmatpush1.xpose.msra.mxu0 0.0
      %2265 = vmatprep.subr.mxu0 0.0
      %2266 = vmatpush1.xpose.msra.mxu0 0.0
      %2267 = vmatprep.subr.mxu0 0.0
      %2268 = vmatpush1.xpose.msra.mxu0 0.0
      %2269 = vmatprep.subr.mxu0 0.0
      %2270 = vmatpush1.xpose.msra.mxu0 0.0
      %2271 = vmatprep.subr.mxu0 0.0
      %2272 = vmatpush1.xpose.msra.mxu0 0.0
      %2273 = vmatprep.subr.mxu0 0.0
      %2274 = vmatpush1.xpose.msra.mxu0 0.0
      %2275 = vmatprep.subr.mxu0 0.0
      %2276 = vmatpush1.xpose.msra.mxu0 0.0
      %2277 = vmatprep.subr.mxu0 0.0
      %2278 = vmatpush1.xpose.msra.mxu0 0.0
      %2279 = vmatprep.mubr.f32.mxu0 0.0
      %2280 = vmatmul.mubr.f32.gmra.mrb[0].mxu0 %v2211
      %v2281 = vpop.f32.mrb[0].mxu0
      %v2282 = vadd.f32 0.0, %v2281
      %v2283 = vpop.f32.mrb[0].mxu0
      %2284 = vdwg.mxu0
      %v2285 = vsel %vm376, %v2282, -inf
      %2286 = vmax.xlane.f32.xlu0 %v2285
      %v2287 = vpop.xlane.xlu0 %2286
      %v2288 = vsub.f32 %v2282, %v2287
      %v2289 = vmul.f32 %v2288, 1.442695
      %v2290 = vpow.pop %v2289
      %v2291 = vsel %vm376, %v2290, 0.0
      %2292 = vadd.xlane.f32.xlu0 %v2291
      %v2293 = vpop.xlane.xlu0 %2292
      %v2294 = vrcp.pop %v2293
      %v2295 = vmul.f32 %v2290, %v2294
      %2296 = vmatprep.subr.mxu0 0.0
      %2297 = vmatpush1.msra.mxu0 %v2206
      %2298 = vmatprep.subr.mxu0 0.0
      %2299 = vmatpush1.msra.mxu0 0.0
      %2300 = vmatprep.subr.mxu0 0.0
      %2301 = vmatpush1.msra.mxu0 0.0
      %2302 = vmatprep.subr.mxu0 0.0
      %2303 = vmatpush1.msra.mxu0 0.0
      %2304 = vmatprep.subr.mxu0 0.0
      %2305 = vmatpush1.msra.mxu0 0.0
      %2306 = vmatprep.subr.mxu0 0.0
      %2307 = vmatpush1.msra.mxu0 0.0
      %2308 = vmatprep.subr.mxu0 0.0
      %2309 = vmatpush1.msra.mxu0 0.0
      %2310 = vmatprep.subr.mxu0 0.0
      %2311 = vmatpush1.msra.mxu0 0.0
      %2312 = vmatprep.subr.mxu0 0.0
      %2313 = vmatpush1.msra.mxu0 0.0
      %2314 = vmatprep.subr.mxu0 0.0
      %2315 = vmatpush1.msra.mxu0 0.0
      %2316 = vmatprep.subr.mxu0 0.0
      %2317 = vmatpush1.msra.mxu0 0.0
      %2318 = vmatprep.subr.mxu0 0.0
      %2319 = vmatpush1.msra.mxu0 0.0
      %2320 = vmatprep.subr.mxu0 0.0
      %2321 = vmatpush1.msra.mxu0 0.0
      %2322 = vmatprep.subr.mxu0 0.0
      %2323 = vmatpush1.msra.mxu0 0.0
      %2324 = vmatprep.subr.mxu0 0.0
      %2325 = vmatpush1.msra.mxu0 0.0
      %2326 = vmatprep.subr.mxu0 0.0
      %2327 = vmatpush1.msra.mxu0 0.0
      %2328 = vmatprep.subr.mxu0 0.0
      %2329 = vmatpush1.msra.mxu0 0.0
      %2330 = vmatprep.subr.mxu0 0.0
      %2331 = vmatpush1.msra.mxu0 0.0
      %2332 = vmatprep.subr.mxu0 0.0
      %2333 = vmatpush1.msra.mxu0 0.0
      %2334 = vmatprep.subr.mxu0 0.0
      %2335 = vmatpush1.msra.mxu0 0.0
      %2336 = vmatprep.subr.mxu0 0.0
      %2337 = vmatpush1.msra.mxu0 0.0
      %2338 = vmatprep.subr.mxu0 0.0
      %2339 = vmatpush1.msra.mxu0 0.0
      %2340 = vmatprep.subr.mxu0 0.0
      %2341 = vmatpush1.msra.mxu0 0.0
      %2342 = vmatprep.subr.mxu0 0.0
      %2343 = vmatpush1.msra.mxu0 0.0
      %2344 = vmatprep.subr.mxu0 0.0
      %2345 = vmatpush1.msra.mxu0 0.0
      %2346 = vmatprep.subr.mxu0 0.0
      %2347 = vmatpush1.msra.mxu0 0.0
      %2348 = vmatprep.subr.mxu0 0.0
      %2349 = vmatpush1.msra.mxu0 0.0
      %2350 = vmatprep.subr.mxu0 0.0
      %2351 = vmatpush1.msra.mxu0 0.0
      %2352 = vmatprep.subr.mxu0 0.0
      %2353 = vmatpush1.msra.mxu0 0.0
      %2354 = vmatprep.subr.mxu0 0.0
      %2355 = vmatpush1.msra.mxu0 0.0
      %2356 = vmatprep.subr.mxu0 0.0
      %2357 = vmatpush1.msra.mxu0 0.0
      %2358 = vmatprep.subr.mxu0 0.0
      %2359 = vmatpush1.msra.mxu0 0.0
      %2360 = vmatprep.mubr.f32.mxu0 0.0
      %2361 = vmatmul.mubr.f32.gmra.mrb[0].mxu0 %v551
      %v2362 = vpop.f32.mrb[0].mxu0
      %v2363 = vadd.f32 0.0, %v2362
      %v2364 = vpop.f32.mrb[0].mxu0
      %2365 = vmatprep.mubr.f32.mxu0 0.0
      %2366 = vmatmul.mubr.f32.gmra.mrb[0].mxu0 %v554
      %v2367 = vpop.f32.mrb[0].mxu0
      %v2368 = vadd.f32 0.0, %v2367
      %v2369 = vpop.f32.mrb[0].mxu0
      %2370 = vmatprep.mubr.f32.mxu0 0.0
      %2371 = vmatmul.mubr.f32.gmra.mrb[0].mxu0 %v557
      %v2372 = vpop.f32.mrb[0].mxu0
      %v2373 = vadd.f32 0.0, %v2372
      %v2374 = vpop.f32.mrb[0].mxu0
      %2375 = vmatprep.mubr.f32.mxu0 0.0
      %2376 = vmatmul.mubr.f32.gmra.mrb[0].mxu0 %v560
      %v2377 = vpop.f32.mrb[0].mxu0
      %v2378 = vadd.f32 0.0, %v2377
      %v2379 = vpop.f32.mrb[0].mxu0
      %2380 = vmatprep.mubr.f32.mxu0 0.0
      %2381 = vmatmul.mubr.f32.gmra.mrb[0].mxu0 %v563
      %v2382 = vpop.f32.mrb[0].mxu0
      %v2383 = vadd.f32 0.0, %v2382
      %v2384 = vpop.f32.mrb[0].mxu0
      %2385 = vmatprep.mubr.f32.mxu0 0.0
      %2386 = vmatmul.mubr.f32.gmra.mrb[0].mxu0 %v566
      %v2387 = vpop.f32.mrb[0].mxu0
      %v2388 = vadd.f32 0.0, %v2387
      %v2389 = vpop.f32.mrb[0].mxu0
      %2390 = vmatprep.mubr.f32.mxu0 0.0
      %2391 = vmatmul.mubr.f32.gmra.mrb[0].mxu0 %v569
      %v2392 = vpop.f32.mrb[0].mxu0
      %v2393 = vadd.f32 0.0, %v2392
      %v2394 = vpop.f32.mrb[0].mxu0
      %2395 = vmatprep.mubr.f32.mxu0 0.0
      %2396 = vmatmul.mubr.f32.gmra.mrb[0].mxu0 %v572
      %v2397 = vpop.f32.mrb[0].mxu0
      %v2398 = vadd.f32 0.0, %v2397
      %v2399 = vpop.f32.mrb[0].mxu0
      %2400 = vdwg.mxu0
      %2401 = vmatprep.subr.mxu0 0.0
      %2402 = vmatpush1.msra.mxu0 %v2295
      %2403 = vmatprep.subr.mxu0 0.0
      %2404 = vmatpush1.msra.mxu0 0.0
      %2405 = vmatprep.subr.mxu0 0.0
      %2406 = vmatpush1.msra.mxu0 0.0
      %2407 = vmatprep.subr.mxu0 0.0
      %2408 = vmatpush1.msra.mxu0 0.0
      %2409 = vmatprep.subr.mxu0 0.0
      %2410 = vmatpush1.msra.mxu0 0.0
      %2411 = vmatprep.subr.mxu0 0.0
      %2412 = vmatpush1.msra.mxu0 0.0
      %2413 = vmatprep.subr.mxu0 0.0
      %2414 = vmatpush1.msra.mxu0 0.0
      %2415 = vmatprep.subr.mxu0 0.0
      %2416 = vmatpush1.msra.mxu0 0.0
      %2417 = vmatprep.subr.mxu0 0.0
      %2418 = vmatpush1.msra.mxu0 0.0
      %2419 = vmatprep.subr.mxu0 0.0
      %2420 = vmatpush1.msra.mxu0 0.0
      %2421 = vmatprep.subr.mxu0 0.0
      %2422 = vmatpush1.msra.mxu0 0.0
      %2423 = vmatprep.subr.mxu0 0.0
      %2424 = vmatpush1.msra.mxu0 0.0
      %2425 = vmatprep.subr.mxu0 0.0
      %2426 = vmatpush1.msra.mxu0 0.0
      %2427 = vmatprep.subr.mxu0 0.0
      %2428 = vmatpush1.msra.mxu0 0.0
      %2429 = vmatprep.subr.mxu0 0.0
      %2430 = vmatpush1.msra.mxu0 0.0
      %2431 = vmatprep.subr.mxu0 0.0
      %2432 = vmatpush1.msra.mxu0 0.0
      %2433 = vmatprep.subr.mxu0 0.0
      %2434 = vmatpush1.msra.mxu0 0.0
      %2435 = vmatprep.subr.mxu0 0.0
      %2436 = vmatpush1.msra.mxu0 0.0
      %2437 = vmatprep.subr.mxu0 0.0
      %2438 = vmatpush1.msra.mxu0 0.0
      %2439 = vmatprep.subr.mxu0 0.0
      %2440 = vmatpush1.msra.mxu0 0.0
      %2441 = vmatprep.subr.mxu0 0.0
      %2442 = vmatpush1.msra.mxu0 0.0
      %2443 = vmatprep.subr.mxu0 0.0
      %2444 = vmatpush1.msra.mxu0 0.0
      %2445 = vmatprep.subr.mxu0 0.0
      %2446 = vmatpush1.msra.mxu0 0.0
      %2447 = vmatprep.subr.mxu0 0.0
      %2448 = vmatpush1.msra.mxu0 0.0
      %2449 = vmatprep.subr.mxu0 0.0
      %2450 = vmatpush1.msra.mxu0 0.0
      %2451 = vmatprep.subr.mxu0 0.0
      %2452 = vmatpush1.msra.mxu0 0.0
      %2453 = vmatprep.subr.mxu0 0.0
      %2454 = vmatpush1.msra.mxu0 0.0
      %2455 = vmatprep.subr.mxu0 0.0
      %2456 = vmatpush1.msra.mxu0 0.0
      %2457 = vmatprep.subr.mxu0 0.0
      %2458 = vmatpush1.msra.mxu0 0.0
      %2459 = vmatprep.subr.mxu0 0.0
      %2460 = vmatpush1.msra.mxu0 0.0
      %2461 = vmatprep.subr.mxu0 0.0
      %2462 = vmatpush1.msra.mxu0 0.0
      %2463 = vmatprep.subr.mxu0 0.0
      %2464 = vmatpush1.msra.mxu0 0.0
      %2465 = vmatprep.mubr.f32.mxu0 0.0
      %2466 = vmatmul.mubr.f32.gmra.mrb[0].mxu0 %v680
      %v2467 = vpop.f32.mrb[0].mxu0
      %v2468 = vadd.f32 0.0, %v2467
      %v2469 = vpop.f32.mrb[0].mxu0
      %2470 = vmatprep.mubr.f32.mxu0 0.0
      %2471 = vmatmul.mubr.f32.gmra.mrb[0].mxu0 %v683
      %v2472 = vpop.f32.mrb[0].mxu0
      %v2473 = vadd.f32 0.0, %v2472
      %v2474 = vpop.f32.mrb[0].mxu0
      %2475 = vmatprep.mubr.f32.mxu0 0.0
      %2476 = vmatmul.mubr.f32.gmra.mrb[0].mxu0 %v686
      %v2477 = vpop.f32.mrb[0].mxu0
      %v2478 = vadd.f32 0.0, %v2477
      %v2479 = vpop.f32.mrb[0].mxu0
      %2480 = vmatprep.mubr.f32.mxu0 0.0
      %2481 = vmatmul.mubr.f32.gmra.mrb[0].mxu0 %v689
      %v2482 = vpop.f32.mrb[0].mxu0
      %v2483 = vadd.f32 0.0, %v2482
      %v2484 = vpop.f32.mrb[0].mxu0
      %2485 = vmatprep.mubr.f32.mxu0 0.0
      %2486 = vmatmul.mubr.f32.gmra.mrb[0].mxu0 %v692
      %v2487 = vpop.f32.mrb[0].mxu0
      %v2488 = vadd.f32 0.0, %v2487
      %v2489 = vpop.f32.mrb[0].mxu0
      %2490 = vmatprep.mubr.f32.mxu0 0.0
      %2491 = vmatmul.mubr.f32.gmra.mrb[0].mxu0 %v695
      %v2492 = vpop.f32.mrb[0].mxu0
      %v2493 = vadd.f32 0.0, %v2492
      %v2494 = vpop.f32.mrb[0].mxu0
      %2495 = vmatprep.mubr.f32.mxu0 0.0
      %2496 = vmatmul.mubr.f32.gmra.mrb[0].mxu0 %v698
      %v2497 = vpop.f32.mrb[0].mxu0
      %v2498 = vadd.f32 0.0, %v2497
      %v2499 = vpop.f32.mrb[0].mxu0
      %2500 = vmatprep.mubr.f32.mxu0 0.0
      %2501 = vmatmul.mubr.f32.gmra.mrb[0].mxu0 %v701
      %v2502 = vpop.f32.mrb[0].mxu0
      %v2503 = vadd.f32 0.0, %v2502
      %v2504 = vpop.f32.mrb[0].mxu0
      %2505 = vdwg.mxu0
      %2514 = vrot.lane.b32.xlu0 %v2468, 8
      %v2515 = vpop.permute.xlu0 %2514
      %2516 = vrot.lane.b32.xlu0 %v2473, 8
      %v2517 = vpop.permute.xlu0 %2516
      %2518 = vrot.lane.b32.xlu0 %v2478, 8
      %v2519 = vpop.permute.xlu0 %2518
      %2520 = vrot.lane.b32.xlu0 %v2483, 8
      %v2521 = vpop.permute.xlu0 %2520
      %2522 = vrot.lane.b32.xlu0 %v2488, 8
      %v2523 = vpop.permute.xlu0 %2522
      %2524 = vrot.lane.b32.xlu0 %v2493, 8
      %v2525 = vpop.permute.xlu0 %2524
      %2526 = vrot.lane.b32.xlu0 %v2498, 8
      %v2527 = vpop.permute.xlu0 %2526
      %2528 = vrot.lane.b32.xlu0 %v2503, 8
      %v2529 = vpop.permute.xlu0 %2528
      %v2538 = vsel %vm376, %v2363, %v2515
      %v2539 = vsel %vm376, %v2368, %v2517
      %v2540 = vsel %vm376, %v2373, %v2519
      %v2541 = vsel %vm376, %v2378, %v2521
      %v2542 = vsel %vm376, %v2383, %v2523
      %v2543 = vsel %vm376, %v2388, %v2525
      %v2544 = vsel %vm376, %v2393, %v2527
      %v2545 = vsel %vm376, %v2398, %v2529
      %v2547 = vsel %vm848, %v2538, 0
      %v2550 = vsel %vm848, %v2539, 0
      %v2553 = vsel %vm848, %v2540, 0
      %v2556 = vsel %vm848, %v2541, 0
      %v2559 = vsel %vm848, %v2542, 0
      %v2562 = vsel %vm848, %v2543, 0
      %v2565 = vsel %vm848, %v2544, 0
      %v2568 = vsel %vm848, %v2545, 0
      %2570 = vmatprep.subr.mxu0 0.0
      %2571 = vmatpush1.msra.mxu0 %v371
      %2572 = vmatprep.subr.mxu0 0.0
      %2573 = vmatpush1.msra.mxu0 %v372
      %2574 = vmatprep.subr.mxu0 0.0
      %2575 = vmatpush1.msra.mxu0 0.0
      %2576 = vmatprep.subr.mxu0 0.0
      %2577 = vmatpush1.msra.mxu0 0.0
      %2578 = vmatprep.subr.mxu0 0.0
      %2579 = vmatpush1.msra.mxu0 0.0
      %2580 = vmatprep.subr.mxu0 0.0
      %2581 = vmatpush1.msra.mxu0 0.0
      %2582 = vmatprep.subr.mxu0 0.0
      %2583 = vmatpush1.msra.mxu0 0.0
      %2584 = vmatprep.subr.mxu0 0.0
      %2585 = vmatpush1.msra.mxu0 0.0
      %2586 = vmatprep.subr.mxu0 0.0
      %2587 = vmatpush1.msra.mxu0 0.0
      %2588 = vmatprep.subr.mxu0 0.0
      %2589 = vmatpush1.msra.mxu0 0.0
      %2590 = vmatprep.subr.mxu0 0.0
      %2591 = vmatpush1.msra.mxu0 0.0
      %2592 = vmatprep.subr.mxu0 0.0
      %2593 = vmatpush1.msra.mxu0 0.0
      %2594 = vmatprep.subr.mxu0 0.0
      %2595 = vmatpush1.msra.mxu0 0.0
      %2596 = vmatprep.subr.mxu0 0.0
      %2597 = vmatpush1.msra.mxu0 0.0
      %2598 = vmatprep.subr.mxu0 0.0
      %2599 = vmatpush1.msra.mxu0 0.0
      %2600 = vmatprep.subr.mxu0 0.0
      %2601 = vmatpush1.msra.mxu0 0.0
      %2602 = vmatprep.subr.mxu0 0.0
      %2603 = vmatpush1.msra.mxu0 0.0
      %2604 = vmatprep.subr.mxu0 0.0
      %2605 = vmatpush1.msra.mxu0 0.0
      %2606 = vmatprep.subr.mxu0 0.0
      %2607 = vmatpush1.msra.mxu0 0.0
      %2608 = vmatprep.subr.mxu0 0.0
      %2609 = vmatpush1.msra.mxu0 0.0
      %2610 = vmatprep.subr.mxu0 0.0
      %2611 = vmatpush1.msra.mxu0 0.0
      %2612 = vmatprep.subr.mxu0 0.0
      %2613 = vmatpush1.msra.mxu0 0.0
      %2614 = vmatprep.subr.mxu0 0.0
      %2615 = vmatpush1.msra.mxu0 0.0
      %2616 = vmatprep.subr.mxu0 0.0
      %2617 = vmatpush1.msra.mxu0 0.0
      %2618 = vmatprep.subr.mxu0 0.0
      %2619 = vmatpush1.msra.mxu0 0.0
      %2620 = vmatprep.subr.mxu0 0.0
      %2621 = vmatpush1.msra.mxu0 0.0
      %2622 = vmatprep.subr.mxu0 0.0
      %2623 = vmatpush1.msra.mxu0 0.0
      %2624 = vmatprep.subr.mxu0 0.0
      %2625 = vmatpush1.msra.mxu0 0.0
      %2626 = vmatprep.subr.mxu0 0.0
      %2627 = vmatpush1.msra.mxu0 0.0
      %2628 = vmatprep.subr.mxu0 0.0
      %2629 = vmatpush1.msra.mxu0 0.0
      %2630 = vmatprep.subr.mxu0 0.0
      %2631 = vmatpush1.msra.mxu0 0.0
      %2632 = vmatprep.subr.mxu0 0.0
      %2633 = vmatpush1.msra.mxu0 0.0
      %2634 = vmatprep.mubr.f32.mxu0 0.0
      %2635 = vmatmul.mubr.f32.gmra.mrb[0].mxu0 %v2547
      %v2636 = vpop.f32.mrb[0].mxu0
      %v2637 = vadd.f32 0.0, %v2636
      %v2638 = vpop.f32.mrb[0].mxu0
      %2639 = vmatprep.mubr.f32.mxu0 0.0
      %2640 = vmatmul.mubr.f32.gmra.mrb[0].mxu0 %v2550
      %v2641 = vpop.f32.mrb[0].mxu0
      %v2642 = vadd.f32 0.0, %v2641
      %v2643 = vpop.f32.mrb[0].mxu0
      %2644 = vmatprep.mubr.f32.mxu0 0.0
      %2645 = vmatmul.mubr.f32.gmra.mrb[0].mxu0 %v2553
      %v2646 = vpop.f32.mrb[0].mxu0
      %v2647 = vadd.f32 0.0, %v2646
      %v2648 = vpop.f32.mrb[0].mxu0
      %2649 = vmatprep.mubr.f32.mxu0 0.0
      %2650 = vmatmul.mubr.f32.gmra.mrb[0].mxu0 %v2556
      %v2651 = vpop.f32.mrb[0].mxu0
      %v2652 = vadd.f32 0.0, %v2651
      %v2653 = vpop.f32.mrb[0].mxu0
      %2654 = vmatprep.mubr.f32.mxu0 0.0
      %2655 = vmatmul.mubr.f32.gmra.mrb[0].mxu0 %v2559
      %v2656 = vpop.f32.mrb[0].mxu0
      %v2657 = vadd.f32 0.0, %v2656
      %v2658 = vpop.f32.mrb[0].mxu0
      %2659 = vmatprep.mubr.f32.mxu0 0.0
      %2660 = vmatmul.mubr.f32.gmra.mrb[0].mxu0 %v2562
      %v2661 = vpop.f32.mrb[0].mxu0
      %v2662 = vadd.f32 0.0, %v2661
      %v2663 = vpop.f32.mrb[0].mxu0
      %2664 = vmatprep.mubr.f32.mxu0 0.0
      %2665 = vmatmul.mubr.f32.gmra.mrb[0].mxu0 %v2565
      %v2666 = vpop.f32.mrb[0].mxu0
      %v2667 = vadd.f32 0.0, %v2666
      %v2668 = vpop.f32.mrb[0].mxu0
      %2669 = vmatprep.mubr.f32.mxu0 0.0
      %2670 = vmatmul.mubr.f32.gmra.mrb[0].mxu0 %v2568
      %v2671 = vpop.f32.mrb[0].mxu0
      %v2672 = vadd.f32 0.0, %v2671
      %v2673 = vpop.f32.mrb[0].mxu0
      %2674 = vdwg.mxu0
      %s2675 = scalar_lea.vmem %s266, 192
      %2676 = vst [vmem:[%s2675] sm:$0xff] %v2637
      %2677 = vst [vmem:[%s2675 + $0x8] sm:$0xff] %v2642
      %2678 = vst [vmem:[%s2675 + $0x10] sm:$0xff] %v2647
      %2679 = vst [vmem:[%s2675 + $0x18] sm:$0xff] %v2652
      %2680 = vst [vmem:[%s2675 + $0x20] sm:$0xff] %v2657
      %2681 = vst [vmem:[%s2675 + $0x28] sm:$0xff] %v2662
      %2682 = vst [vmem:[%s2675 + $0x30] sm:$0xff] %v2667
      %2683 = vst [vmem:[%s2675 + $0x38] sm:$0xff] %v2672
      %p2684 = scmp.lt.s32.totalorder %s20, 1
      %s2685 = scalar_select %p2684, %s20, 1
      %p2686 = scmp.lt.s32.totalorder %s21, 1
      %s2687 = scalar_select %p2686, %s21, 1
      %s2688 = smul.addr %s2687, 32
      %s2689 = smul.addr %s2685, 64
      %s2690 = sadd.s32 %s2688, %s2689
      %s2691 = smul.addr %s2690, 8
      %s2692 = scalar_lea.vmem %s5, %s2691
      // Predicated region
      $region41: #{run.1} parent=39 // pred_check
        %p2693 = pneg %p163
      $region42: #{run.1} parent=39 // pred_check_branch
        %2695 = sbr.rel (%p2693) target = $region44
      $region43: #{run.1} parent=39 // pred_region
        _
      $region44: #{run.1} parent=39 // pred_fallthru
        _
    $region40: #{run.1} parent=5 // pred_fallthru
      _
    %p2696 = scmp.le.s32.totalorder 2, %s11
    // Predicated region
    $region45: #{run.1} parent=5 // pred_check
      %p2697 = pneg %p2696
    $region46: #{run.1} parent=5 // pred_check_branch
      %2699 = sbr.rel (%p2697) target = $region48
    $region47: #{run.1} parent=5 // pred_region
      %s2700 = ssub.s32 %s11, 2
      // Predicated region
      $region49: #{run.1} parent=47 // pred_check
        %p2701 = pneg %p169
      $region50: #{run.1} parent=47 // pred_check_branch
        %2703 = sbr.rel (%p2701) target = $region52
      $region51: #{run.1} parent=47 // pred_region
        %p2704 = scmp.lt.s32.totalorder %s22, 1
        %s2705 = scalar_select %p2704, %s22, 1
        %p2706 = scmp.lt.s32.totalorder %s23, 1
        %s2707 = scalar_select %p2706, %s23, 1
        %s2708 = smul.addr %s2707, 32
        %s2709 = smul.addr %s2705, 64
        %s2710 = sadd.s32 %s2708, %s2709
        %s2711 = smul.addr %s2710, 8
        %s2712 = scalar_lea.vmem %s5, %s2711
      $region52: #{run.1} parent=47 // pred_fallthru
        _
    $region48: #{run.1} parent=5 // pred_fallthru
      _
  $region6: #{run.1} parent=0 // loop_footer
    %s15 = sadd.s32 1, %s11
  $region7: #{run.1} parent=0 // loop_footer_branch
    %10 = sbr.rel target = $region3
  $region8: #{run.1} parent=0 // loop_exit
    _

</llo_original>
